<compile_context>
chip_gen: v6e
topology: v6e:2x2x1
jax: 0.10.0
libtpu: 0.0.40
codegen_flags: <defaults>
</compile_context>

<pallas_src>
import math
import numpy as np
import jax
import jax.numpy as jnp
from jax.experimental import pallas as pl
from jax.experimental.pallas import tpu as pltpu

# ---- model dimensions (small, consistent with the module) -------------------
B = 2        # batch
S = 8        # sequence length
D = 32       # d_model
H = 4        # heads
D_K = D // H # head dim
F = 64       # d_ff
EPS = 1e-6
VP_W = H * D # width of the folded V' block (128 lanes)


# ----------------------------- Pallas kernel ---------------------------------
def encoder_block_kernel(x_ref, wf_ref, bf_ref, bo_ref,
                         w1_ref, b1_ref, w2_ref, b2_ref, ln_ref, o_ref):
    x = x_ref[...].astype(jnp.float32)            # (B*S, D)

    def recip(d):
        # EUP approximate reciprocal + one Newton-Raphson step (f32-accurate).
        y = pl.reciprocal(d, approx=True)
        return y * (2.0 - d * y)

    def layer_norm(v, alpha, beta):
        mean = jnp.mean(v, axis=-1, keepdims=True)
        # torch .std() default: unbiased (divide by D-1); divide by (std + eps)
        var = jnp.sum((v - mean) ** 2, axis=-1, keepdims=True) * (1.0 / (D - 1))
        inv = recip(jnp.sqrt(var) + EPS)
        return (v - mean) * (alpha * inv) + beta

    alpha1 = ln_ref[0, 0]
    beta1 = ln_ref[0, 1]
    alpha2 = ln_ref[0, 2]
    beta2 = ln_ref[0, 3]

    # ---------------- residual connection 0: self-attention ------------------
    xn = layer_norm(x, alpha1, beta1)
    # Fused projection: one matmul -> [V'(128) | Q(32) | K(32)].
    # 1/sqrt(d_k) is already folded into the Q columns; W_o is folded into V'.
    proj = jnp.dot(xn, wf_ref[...],
                   preferred_element_type=jnp.float32) + bf_ref[...]   # (B*S, 192)
    proj3 = proj.reshape(B, S, VP_W + 2 * D)       # split at the sublane tile

    attn = jnp.zeros((B, S, D), jnp.float32)
    for h in range(H):                             # static unroll over heads
        q_h = proj3[:, :, VP_W + h * D_K: VP_W + (h + 1) * D_K]          # (B,S,d_k)
        k_h = proj3[:, :, VP_W + D + h * D_K: VP_W + D + (h + 1) * D_K]  # (B,S,d_k)
        vp_h = proj3[:, :, h * D:(h + 1) * D]      # 32-lane aligned slice of V'
        # NOTE: src_mask intentionally not applied (non-in-place masked_fill
        # in the reference discards its result).
        s = jnp.einsum('bqd,bkd->bqk', q_h, k_h,
                       preferred_element_type=jnp.float32)
        s = s - jnp.max(s, axis=-1, keepdims=True)
        e = jnp.exp(s)
        p = e * recip(jnp.sum(e, axis=-1, keepdims=True))
        # Context with W_o already folded in: sum_h P_h @ V'_h.
        attn = attn + jnp.einsum('bqk,bkd->bqd', p, vp_h,
                                 preferred_element_type=jnp.float32)
    x1 = x + attn.reshape(B * S, D) + bo_ref[...]  # dropout == identity (eval)

    # ---------------- residual connection 1: feed-forward ---------------------
    xn2 = layer_norm(x1, alpha2, beta2)
    h1 = jnp.dot(xn2, w1_ref[...], preferred_element_type=jnp.float32) + b1_ref[...]
    h1 = jnp.maximum(h1, 0.0)                      # relu; FF dropout == identity
    ff = jnp.dot(h1, w2_ref[...], preferred_element_type=jnp.float32) + b2_ref[...]
    o_ref[...] = (x1 + ff).astype(o_ref.dtype)


# ----------------------------- one-time host prep -----------------------------
def prepare_params(params):
    """One-time weight preprocessing (hoisted out of the call path).

    Done in float64 numpy so the W_o fold introduces no extra rounding error.
    """
    (wq, bq, wk, bk, wv, bv, wo, bo, w1, b1, w2, b2, ln) = [
        np.asarray(p, dtype=np.float64) for p in params]

    scale = 1.0 / math.sqrt(D_K)
    wo_t = wo.T                                   # (D, D): rows index concat(ctx_h)
    w_vo_blocks, b_vo_blocks = [], []
    for h in range(H):
        sl = slice(h * D_K, (h + 1) * D_K)
        wo_slice = wo_t[sl, :]                    # (d_k, D)
        w_vo_blocks.append(wv[sl, :].T @ wo_slice)   # (D, D)   = Wv_h^T @ Wo_slice_h
        b_vo_blocks.append(bv[:, sl] @ wo_slice)     # (1, D)   = bv_h @ Wo_slice_h
    w_vo = np.concatenate(w_vo_blocks, axis=1)    # (D, H*D) = (32, 128)
    b_vo = np.concatenate(b_vo_blocks, axis=1)    # (1, 128)

    # Lane order [V'(128) | Q(32) | K(32)]; 1/sqrt(d_k) folded into Q.
    w_fused = np.concatenate([w_vo, wq.T * scale, wk.T], axis=1)   # (32, 192)
    b_fused = np.concatenate([b_vo, bq * scale, bk], axis=1)       # (1, 192)

    prepped = (w_fused, b_fused, bo, w1.T, b1, w2.T, b2, ln)
    return tuple(jnp.asarray(a, dtype=jnp.float32) for a in prepped)


# ----------------------------- wrapper ----------------------------------------
def _encoder_block(x, prepped):
    (w_fused, b_fused, bo, w1_t, b1, w2_t, b2, ln) = prepped

    # Fold the batch into the row axis; single kernel invocation (no grid).
    x2 = x.reshape(B * S, D)

    vmem = pl.BlockSpec(memory_space=pltpu.MemorySpace.VMEM)
    smem = pl.BlockSpec(memory_space=pltpu.MemorySpace.SMEM)

    out = pl.pallas_call(
        encoder_block_kernel,
        out_shape=jax.ShapeDtypeStruct((B * S, D), x.dtype),
        in_specs=[vmem,                 # x (flattened)
                  vmem, vmem,           # fused [V'|Q|K] weight / bias
                  vmem,                 # b_o
                  vmem, vmem,           # linear1^T, b1
                  vmem, vmem,           # linear2^T, b2
                  smem],                # layernorm scalars
        out_specs=vmem,
    )(x2, w_fused, b_fused, bo, w1_t, b1, w2_t, b2, ln)
    return out.reshape(B, S, D)


encoder_block = jax.jit(_encoder_block)


# ----------------------------- pure-JAX reference ------------------------------
def _layer_norm_ref(x, alpha, beta):
    mean = jnp.mean(x, axis=-1, keepdims=True)
    std = jnp.sqrt(jnp.sum((x - mean) ** 2, axis=-1, keepdims=True) / (x.shape[-1] - 1))
    return alpha * (x - mean) / (std + EPS) + beta


def encoder_block_ref(x, params):
    (wq, bq, wk, bk, wv, bv, wo, bo, w1, b1, w2, b2, ln) = params
    a1, be1, a2, be2 = ln[0, 0], ln[0, 1], ln[0, 2], ln[0, 3]

    xn = _layer_norm_ref(x, a1, be1)
    q = xn @ wq.T + bq
    k = xn @ wk.T + bk
    v = xn @ wv.T + bv
    sh = lambda t: t.reshape(B, S, H, D_K).transpose(0, 2, 1, 3)
    qh, kh, vh = sh(q), sh(k), sh(v)
    scores = qh @ kh.transpose(0, 1, 3, 2) / math.sqrt(D_K)
    p = jax.nn.softmax(scores, axis=-1)
    attn = (p @ vh).transpose(0, 2, 1, 3).reshape(B, S, D)
    attn = attn @ wo.T + bo
    x1 = x + attn

    xn2 = _layer_norm_ref(x1, a2, be2)
    ff = jnp.maximum(xn2 @ w1.T + b1, 0.0) @ w2.T + b2
    return x1 + ff


# ----------------------------- main --------------------------------------------
if __name__ == "__main__":
    key = jax.random.PRNGKey(0)
    ks = jax.random.split(key, 16)

    def lin(kw, out_f, in_f):
        bound = 1.0 / math.sqrt(in_f)
        w = jax.random.uniform(kw, (out_f, in_f), jnp.float32, -bound, bound)
        b = jax.random.uniform(jax.random.fold_in(kw, 1), (1, out_f),
                               jnp.float32, -bound, bound)
        return w, b

    wq, bq = lin(ks[0], D, D)
    wk, bk = lin(ks[1], D, D)
    wv, bv = lin(ks[2], D, D)
    wo, bo = lin(ks[3], D, D)
    w1, b1 = lin(ks[4], F, D)
    w2, b2 = lin(ks[5], D, F)
    # LayerNormalization params: alpha=1, beta=0 (two independent norms)
    ln = jnp.array([[1.0, 0.0, 1.0, 0.0]], dtype=jnp.float32)

    params = (wq, bq, wk, bk, wv, bv, wo, bo, w1, b1, w2, b2, ln)
    prepped = prepare_params(params)       # one-time, outside the call path

    x = jax.random.normal(ks[6], (B, S, D), dtype=jnp.float32)
    # src_mask exists in the PyTorch API but has no effect (non-in-place
    # masked_fill in the reference) -> not consumed by the kernel.
    src_mask = jnp.ones((B, 1, 1, S), dtype=jnp.float32)  # noqa: F841

    out = encoder_block(x, prepped)
    out = jax.block_until_ready(out)

    ref = encoder_block_ref(x, params)
    np.testing.assert_allclose(np.asarray(out), np.asarray(ref),
                               rtol=1e-4, atol=1e-4)
    print("KERNEL_OK")
</pallas_src>

<mosaic_0001>
module attributes {stable_mosaic.version = 11 : i64} {
  func.func @encoder_block_kernel(%arg0: memref<16x32xf32, #tpu.memory_space<vmem>>, %arg1: memref<32x192xf32, #tpu.memory_space<vmem>>, %arg2: memref<1x192xf32, #tpu.memory_space<vmem>>, %arg3: memref<1x32xf32, #tpu.memory_space<vmem>>, %arg4: memref<32x64xf32, #tpu.memory_space<vmem>>, %arg5: memref<1x64xf32, #tpu.memory_space<vmem>>, %arg6: memref<64x32xf32, #tpu.memory_space<vmem>>, %arg7: memref<1x32xf32, #tpu.memory_space<vmem>>, %arg8: memref<1x4xf32, #tpu.memory_space<smem>>, %arg9: memref<16x32xf32, #tpu.memory_space<vmem>>) attributes {dimension_semantics = [], scalar_prefetch = 0 : i64, scratch_operands = 0 : i64, tpu.core_type = #tpu.core_type<tc>} {
    %c0 = arith.constant 0 : index
    %c0_0 = arith.constant 0 : index
    %0 = vector.load %arg0[%c0, %c0_0] : memref<16x32xf32, #tpu.memory_space<vmem>>, vector<16x32xf32>
    %c0_1 = arith.constant 0 : index
    %c0_2 = arith.constant 0 : index
    %1 = memref.load %arg8[%c0_1, %c0_2] : memref<1x4xf32, #tpu.memory_space<smem>>
    %c0_3 = arith.constant 0 : index
    %c1 = arith.constant 1 : index
    %2 = memref.load %arg8[%c0_3, %c1] : memref<1x4xf32, #tpu.memory_space<smem>>
    %c0_4 = arith.constant 0 : index
    %c2 = arith.constant 2 : index
    %3 = memref.load %arg8[%c0_4, %c2] : memref<1x4xf32, #tpu.memory_space<smem>>
    %c0_5 = arith.constant 0 : index
    %c3 = arith.constant 3 : index
    %4 = memref.load %arg8[%c0_5, %c3] : memref<1x4xf32, #tpu.memory_space<smem>>
    %cst = arith.constant dense<0.000000e+00> : vector<16xf32>
    %5 = vector.multi_reduction <add>, %0, %cst [1] : vector<16x32xf32> to vector<16xf32>
    %6 = vector.shape_cast %5 : vector<16xf32> to vector<16x1xf32>
    %cst_6 = arith.constant 3.200000e+01 : f32
    %7 = vector.broadcast %cst_6 : f32 to vector<16x1xf32>
    %8 = arith.divf %6, %7 : vector<16x1xf32>
    %9 = vector.broadcast %8 : vector<16x1xf32> to vector<16x32xf32>
    %10 = arith.subf %0, %9 : vector<16x32xf32>
    %11 = arith.mulf %10, %10 : vector<16x32xf32>
    %cst_7 = arith.constant dense<0.000000e+00> : vector<16xf32>
    %12 = vector.multi_reduction <add>, %11, %cst_7 [1] : vector<16x32xf32> to vector<16xf32>
    %13 = vector.shape_cast %12 : vector<16xf32> to vector<16x1xf32>
    %cst_8 = arith.constant 0.0322580636 : f32
    %14 = vector.broadcast %cst_8 : f32 to vector<16x1xf32>
    %15 = arith.mulf %13, %14 : vector<16x1xf32>
    %16 = math.sqrt %15 : vector<16x1xf32>
    %cst_9 = arith.constant 9.99999997E-7 : f32
    %17 = vector.broadcast %cst_9 : f32 to vector<16x1xf32>
    %18 = arith.addf %16, %17 : vector<16x1xf32>
    %19 = tpu.reciprocal %18 {approx = true} : vector<16x1xf32> -> vector<16x1xf32>
    %20 = arith.mulf %18, %19 : vector<16x1xf32>
    %cst_10 = arith.constant 2.000000e+00 : f32
    %21 = vector.broadcast %cst_10 : f32 to vector<16x1xf32>
    %22 = arith.subf %21, %20 : vector<16x1xf32>
    %23 = arith.mulf %19, %22 : vector<16x1xf32>
    %24 = vector.broadcast %8 : vector<16x1xf32> to vector<16x32xf32>
    %25 = arith.subf %0, %24 : vector<16x32xf32>
    %26 = vector.broadcast %1 : f32 to vector<16x1xf32>
    %27 = arith.mulf %26, %23 : vector<16x1xf32>
    %28 = vector.broadcast %27 : vector<16x1xf32> to vector<16x32xf32>
    %29 = arith.mulf %25, %28 : vector<16x32xf32>
    %30 = vector.broadcast %2 : f32 to vector<16x32xf32>
    %31 = arith.addf %29, %30 : vector<16x32xf32>
    %c0_11 = arith.constant 0 : index
    %c0_12 = arith.constant 0 : index
    %32 = vector.load %arg1[%c0_11, %c0_12] : memref<32x192xf32, #tpu.memory_space<vmem>>, vector<32x192xf32>
    %cst_13 = arith.constant dense<0.000000e+00> : vector<16x192xf32>
    %33 = tpu.matmul %31, %32, %cst_13 {dimension_numbers = #tpu.dot_dimension_numbers<[1], [0], [0], [1], [0, 0, 1, 1], [], []>} : vector<16x32xf32>, vector<32x192xf32>, vector<16x192xf32> -> vector<16x192xf32>
    %c0_14 = arith.constant 0 : index
    %c0_15 = arith.constant 0 : index
    %34 = vector.load %arg2[%c0_14, %c0_15] : memref<1x192xf32, #tpu.memory_space<vmem>>, vector<1x192xf32>
    %35 = vector.broadcast %34 : vector<1x192xf32> to vector<16x192xf32>
    %36 = arith.addf %33, %35 : vector<16x192xf32>
    %37 = vector.shape_cast %36 : vector<16x192xf32> to vector<2x8x192xf32>
    %cst_16 = arith.constant 0.000000e+00 : f32
    %38 = vector.broadcast %cst_16 : f32 to vector<2x8x32xf32>
    %39 = vector.extract_strided_slice %37 {offsets = [0, 0, 128], sizes = [2, 8, 8], strides = [1, 1, 1]} : vector<2x8x192xf32> to vector<2x8x8xf32>
    %40 = vector.extract_strided_slice %37 {offsets = [0, 0, 160], sizes = [2, 8, 8], strides = [1, 1, 1]} : vector<2x8x192xf32> to vector<2x8x8xf32>
    %41 = vector.extract_strided_slice %37 {offsets = [0, 0, 0], sizes = [2, 8, 32], strides = [1, 1, 1]} : vector<2x8x192xf32> to vector<2x8x32xf32>
    "tpu.trace_start"() <{level = 10 : i32, message = "bqd,bkd->bqk"}> : () -> ()
    %cst_17 = arith.constant dense<0.000000e+00> : vector<2x8x8xf32>
    %42 = tpu.matmul %39, %40, %cst_17 {dimension_numbers = #tpu.dot_dimension_numbers<[2], [2], [1], [1], [0, 0, 0, 1, 1, 1], [0], [0]>} : vector<2x8x8xf32>, vector<2x8x8xf32>, vector<2x8x8xf32> -> vector<2x8x8xf32>
    "tpu.trace_stop"() : () -> ()
    %cst_18 = arith.constant dense<0xFF800000> : vector<2x8xf32>
    %43 = vector.multi_reduction <maximumf>, %42, %cst_18 [2] : vector<2x8x8xf32> to vector<2x8xf32>
    %44 = vector.shape_cast %43 : vector<2x8xf32> to vector<2x8x1xf32>
    %45 = vector.broadcast %44 : vector<2x8x1xf32> to vector<2x8x8xf32>
    %46 = arith.subf %42, %45 : vector<2x8x8xf32>
    %47 = math.exp %46 : vector<2x8x8xf32>
    %cst_19 = arith.constant dense<0.000000e+00> : vector<2x8xf32>
    %48 = vector.multi_reduction <add>, %47, %cst_19 [2] : vector<2x8x8xf32> to vector<2x8xf32>
    %49 = vector.shape_cast %48 : vector<2x8xf32> to vector<2x8x1xf32>
    %50 = tpu.reciprocal %49 {approx = true} : vector<2x8x1xf32> -> vector<2x8x1xf32>
    %51 = arith.mulf %49, %50 : vector<2x8x1xf32>
    %cst_20 = arith.constant 2.000000e+00 : f32
    %52 = vector.broadcast %cst_20 : f32 to vector<2x8x1xf32>
    %53 = arith.subf %52, %51 : vector<2x8x1xf32>
    %54 = arith.mulf %50, %53 : vector<2x8x1xf32>
    %55 = vector.broadcast %54 : vector<2x8x1xf32> to vector<2x8x8xf32>
    %56 = arith.mulf %47, %55 : vector<2x8x8xf32>
    "tpu.trace_start"() <{level = 10 : i32, message = "bqk,bkd->bqd"}> : () -> ()
    %cst_21 = arith.constant dense<0.000000e+00> : vector<2x8x32xf32>
    %57 = tpu.matmul %56, %41, %cst_21 {dimension_numbers = #tpu.dot_dimension_numbers<[2], [1], [1], [2], [0, 0, 0, 1, 1, 2], [0], [0]>} : vector<2x8x8xf32>, vector<2x8x32xf32>, vector<2x8x32xf32> -> vector<2x8x32xf32>
    "tpu.trace_stop"() : () -> ()
    %58 = arith.addf %38, %57 : vector<2x8x32xf32>
    %59 = vector.extract_strided_slice %37 {offsets = [0, 0, 136], sizes = [2, 8, 8], strides = [1, 1, 1]} : vector<2x8x192xf32> to vector<2x8x8xf32>
    %60 = vector.extract_strided_slice %37 {offsets = [0, 0, 168], sizes = [2, 8, 8], strides = [1, 1, 1]} : vector<2x8x192xf32> to vector<2x8x8xf32>
    %61 = vector.extract_strided_slice %37 {offsets = [0, 0, 32], sizes = [2, 8, 32], strides = [1, 1, 1]} : vector<2x8x192xf32> to vector<2x8x32xf32>
    "tpu.trace_start"() <{level = 10 : i32, message = "bqd,bkd->bqk"}> : () -> ()
    %cst_22 = arith.constant dense<0.000000e+00> : vector<2x8x8xf32>
    %62 = tpu.matmul %59, %60, %cst_22 {dimension_numbers = #tpu.dot_dimension_numbers<[2], [2], [1], [1], [0, 0, 0, 1, 1, 1], [0], [0]>} : vector<2x8x8xf32>, vector<2x8x8xf32>, vector<2x8x8xf32> -> vector<2x8x8xf32>
    "tpu.trace_stop"() : () -> ()
    %cst_23 = arith.constant dense<0xFF800000> : vector<2x8xf32>
    %63 = vector.multi_reduction <maximumf>, %62, %cst_23 [2] : vector<2x8x8xf32> to vector<2x8xf32>
    %64 = vector.shape_cast %63 : vector<2x8xf32> to vector<2x8x1xf32>
    %65 = vector.broadcast %64 : vector<2x8x1xf32> to vector<2x8x8xf32>
    %66 = arith.subf %62, %65 : vector<2x8x8xf32>
    %67 = math.exp %66 : vector<2x8x8xf32>
    %cst_24 = arith.constant dense<0.000000e+00> : vector<2x8xf32>
    %68 = vector.multi_reduction <add>, %67, %cst_24 [2] : vector<2x8x8xf32> to vector<2x8xf32>
    %69 = vector.shape_cast %68 : vector<2x8xf32> to vector<2x8x1xf32>
    %70 = tpu.reciprocal %69 {approx = true} : vector<2x8x1xf32> -> vector<2x8x1xf32>
    %71 = arith.mulf %69, %70 : vector<2x8x1xf32>
    %cst_25 = arith.constant 2.000000e+00 : f32
    %72 = vector.broadcast %cst_25 : f32 to vector<2x8x1xf32>
    %73 = arith.subf %72, %71 : vector<2x8x1xf32>
    %74 = arith.mulf %70, %73 : vector<2x8x1xf32>
    %75 = vector.broadcast %74 : vector<2x8x1xf32> to vector<2x8x8xf32>
    %76 = arith.mulf %67, %75 : vector<2x8x8xf32>
    "tpu.trace_start"() <{level = 10 : i32, message = "bqk,bkd->bqd"}> : () -> ()
    %cst_26 = arith.constant dense<0.000000e+00> : vector<2x8x32xf32>
    %77 = tpu.matmul %76, %61, %cst_26 {dimension_numbers = #tpu.dot_dimension_numbers<[2], [1], [1], [2], [0, 0, 0, 1, 1, 2], [0], [0]>} : vector<2x8x8xf32>, vector<2x8x32xf32>, vector<2x8x32xf32> -> vector<2x8x32xf32>
    "tpu.trace_stop"() : () -> ()
    %78 = arith.addf %58, %77 : vector<2x8x32xf32>
    %79 = vector.extract_strided_slice %37 {offsets = [0, 0, 144], sizes = [2, 8, 8], strides = [1, 1, 1]} : vector<2x8x192xf32> to vector<2x8x8xf32>
    %80 = vector.extract_strided_slice %37 {offsets = [0, 0, 176], sizes = [2, 8, 8], strides = [1, 1, 1]} : vector<2x8x192xf32> to vector<2x8x8xf32>
    %81 = vector.extract_strided_slice %37 {offsets = [0, 0, 64], sizes = [2, 8, 32], strides = [1, 1, 1]} : vector<2x8x192xf32> to vector<2x8x32xf32>
    "tpu.trace_start"() <{level = 10 : i32, message = "bqd,bkd->bqk"}> : () -> ()
    %cst_27 = arith.constant dense<0.000000e+00> : vector<2x8x8xf32>
    %82 = tpu.matmul %79, %80, %cst_27 {dimension_numbers = #tpu.dot_dimension_numbers<[2], [2], [1], [1], [0, 0, 0, 1, 1, 1], [0], [0]>} : vector<2x8x8xf32>, vector<2x8x8xf32>, vector<2x8x8xf32> -> vector<2x8x8xf32>
    "tpu.trace_stop"() : () -> ()
    %cst_28 = arith.constant dense<0xFF800000> : vector<2x8xf32>
    %83 = vector.multi_reduction <maximumf>, %82, %cst_28 [2] : vector<2x8x8xf32> to vector<2x8xf32>
    %84 = vector.shape_cast %83 : vector<2x8xf32> to vector<2x8x1xf32>
    %85 = vector.broadcast %84 : vector<2x8x1xf32> to vector<2x8x8xf32>
    %86 = arith.subf %82, %85 : vector<2x8x8xf32>
    %87 = math.exp %86 : vector<2x8x8xf32>
    %cst_29 = arith.constant dense<0.000000e+00> : vector<2x8xf32>
    %88 = vector.multi_reduction <add>, %87, %cst_29 [2] : vector<2x8x8xf32> to vector<2x8xf32>
    %89 = vector.shape_cast %88 : vector<2x8xf32> to vector<2x8x1xf32>
    %90 = tpu.reciprocal %89 {approx = true} : vector<2x8x1xf32> -> vector<2x8x1xf32>
    %91 = arith.mulf %89, %90 : vector<2x8x1xf32>
    %cst_30 = arith.constant 2.000000e+00 : f32
    %92 = vector.broadcast %cst_30 : f32 to vector<2x8x1xf32>
    %93 = arith.subf %92, %91 : vector<2x8x1xf32>
    %94 = arith.mulf %90, %93 : vector<2x8x1xf32>
    %95 = vector.broadcast %94 : vector<2x8x1xf32> to vector<2x8x8xf32>
    %96 = arith.mulf %87, %95 : vector<2x8x8xf32>
    "tpu.trace_start"() <{level = 10 : i32, message = "bqk,bkd->bqd"}> : () -> ()
    %cst_31 = arith.constant dense<0.000000e+00> : vector<2x8x32xf32>
    %97 = tpu.matmul %96, %81, %cst_31 {dimension_numbers = #tpu.dot_dimension_numbers<[2], [1], [1], [2], [0, 0, 0, 1, 1, 2], [0], [0]>} : vector<2x8x8xf32>, vector<2x8x32xf32>, vector<2x8x32xf32> -> vector<2x8x32xf32>
    "tpu.trace_stop"() : () -> ()
    %98 = arith.addf %78, %97 : vector<2x8x32xf32>
    %99 = vector.extract_strided_slice %37 {offsets = [0, 0, 152], sizes = [2, 8, 8], strides = [1, 1, 1]} : vector<2x8x192xf32> to vector<2x8x8xf32>
    %100 = vector.extract_strided_slice %37 {offsets = [0, 0, 184], sizes = [2, 8, 8], strides = [1, 1, 1]} : vector<2x8x192xf32> to vector<2x8x8xf32>
    %101 = vector.extract_strided_slice %37 {offsets = [0, 0, 96], sizes = [2, 8, 32], strides = [1, 1, 1]} : vector<2x8x192xf32> to vector<2x8x32xf32>
    "tpu.trace_start"() <{level = 10 : i32, message = "bqd,bkd->bqk"}> : () -> ()
    %cst_32 = arith.constant dense<0.000000e+00> : vector<2x8x8xf32>
    %102 = tpu.matmul %99, %100, %cst_32 {dimension_numbers = #tpu.dot_dimension_numbers<[2], [2], [1], [1], [0, 0, 0, 1, 1, 1], [0], [0]>} : vector<2x8x8xf32>, vector<2x8x8xf32>, vector<2x8x8xf32> -> vector<2x8x8xf32>
    "tpu.trace_stop"() : () -> ()
    %cst_33 = arith.constant dense<0xFF800000> : vector<2x8xf32>
    %103 = vector.multi_reduction <maximumf>, %102, %cst_33 [2] : vector<2x8x8xf32> to vector<2x8xf32>
    %104 = vector.shape_cast %103 : vector<2x8xf32> to vector<2x8x1xf32>
    %105 = vector.broadcast %104 : vector<2x8x1xf32> to vector<2x8x8xf32>
    %106 = arith.subf %102, %105 : vector<2x8x8xf32>
    %107 = math.exp %106 : vector<2x8x8xf32>
    %cst_34 = arith.constant dense<0.000000e+00> : vector<2x8xf32>
    %108 = vector.multi_reduction <add>, %107, %cst_34 [2] : vector<2x8x8xf32> to vector<2x8xf32>
    %109 = vector.shape_cast %108 : vector<2x8xf32> to vector<2x8x1xf32>
    %110 = tpu.reciprocal %109 {approx = true} : vector<2x8x1xf32> -> vector<2x8x1xf32>
    %111 = arith.mulf %109, %110 : vector<2x8x1xf32>
    %cst_35 = arith.constant 2.000000e+00 : f32
    %112 = vector.broadcast %cst_35 : f32 to vector<2x8x1xf32>
    %113 = arith.subf %112, %111 : vector<2x8x1xf32>
    %114 = arith.mulf %110, %113 : vector<2x8x1xf32>
    %115 = vector.broadcast %114 : vector<2x8x1xf32> to vector<2x8x8xf32>
    %116 = arith.mulf %107, %115 : vector<2x8x8xf32>
    "tpu.trace_start"() <{level = 10 : i32, message = "bqk,bkd->bqd"}> : () -> ()
    %cst_36 = arith.constant dense<0.000000e+00> : vector<2x8x32xf32>
    %117 = tpu.matmul %116, %101, %cst_36 {dimension_numbers = #tpu.dot_dimension_numbers<[2], [1], [1], [2], [0, 0, 0, 1, 1, 2], [0], [0]>} : vector<2x8x8xf32>, vector<2x8x32xf32>, vector<2x8x32xf32> -> vector<2x8x32xf32>
    "tpu.trace_stop"() : () -> ()
    %118 = arith.addf %98, %117 : vector<2x8x32xf32>
    %119 = vector.shape_cast %118 : vector<2x8x32xf32> to vector<16x32xf32>
    %120 = arith.addf %0, %119 : vector<16x32xf32>
    %c0_37 = arith.constant 0 : index
    %c0_38 = arith.constant 0 : index
    %121 = vector.load %arg3[%c0_37, %c0_38] : memref<1x32xf32, #tpu.memory_space<vmem>>, vector<1x32xf32>
    %122 = vector.broadcast %121 : vector<1x32xf32> to vector<16x32xf32>
    %123 = arith.addf %120, %122 : vector<16x32xf32>
    %cst_39 = arith.constant dense<0.000000e+00> : vector<16xf32>
    %124 = vector.multi_reduction <add>, %123, %cst_39 [1] : vector<16x32xf32> to vector<16xf32>
    %125 = vector.shape_cast %124 : vector<16xf32> to vector<16x1xf32>
    %cst_40 = arith.constant 3.200000e+01 : f32
    %126 = vector.broadcast %cst_40 : f32 to vector<16x1xf32>
    %127 = arith.divf %125, %126 : vector<16x1xf32>
    %128 = vector.broadcast %127 : vector<16x1xf32> to vector<16x32xf32>
    %129 = arith.subf %123, %128 : vector<16x32xf32>
    %130 = arith.mulf %129, %129 : vector<16x32xf32>
    %cst_41 = arith.constant dense<0.000000e+00> : vector<16xf32>
    %131 = vector.multi_reduction <add>, %130, %cst_41 [1] : vector<16x32xf32> to vector<16xf32>
    %132 = vector.shape_cast %131 : vector<16xf32> to vector<16x1xf32>
    %cst_42 = arith.constant 0.0322580636 : f32
    %133 = vector.broadcast %cst_42 : f32 to vector<16x1xf32>
    %134 = arith.mulf %132, %133 : vector<16x1xf32>
    %135 = math.sqrt %134 : vector<16x1xf32>
    %cst_43 = arith.constant 9.99999997E-7 : f32
    %136 = vector.broadcast %cst_43 : f32 to vector<16x1xf32>
    %137 = arith.addf %135, %136 : vector<16x1xf32>
    %138 = tpu.reciprocal %137 {approx = true} : vector<16x1xf32> -> vector<16x1xf32>
    %139 = arith.mulf %137, %138 : vector<16x1xf32>
    %cst_44 = arith.constant 2.000000e+00 : f32
    %140 = vector.broadcast %cst_44 : f32 to vector<16x1xf32>
    %141 = arith.subf %140, %139 : vector<16x1xf32>
    %142 = arith.mulf %138, %141 : vector<16x1xf32>
    %143 = vector.broadcast %127 : vector<16x1xf32> to vector<16x32xf32>
    %144 = arith.subf %123, %143 : vector<16x32xf32>
    %145 = vector.broadcast %3 : f32 to vector<16x1xf32>
    %146 = arith.mulf %145, %142 : vector<16x1xf32>
    %147 = vector.broadcast %146 : vector<16x1xf32> to vector<16x32xf32>
    %148 = arith.mulf %144, %147 : vector<16x32xf32>
    %149 = vector.broadcast %4 : f32 to vector<16x32xf32>
    %150 = arith.addf %148, %149 : vector<16x32xf32>
    %c0_45 = arith.constant 0 : index
    %c0_46 = arith.constant 0 : index
    %151 = vector.load %arg4[%c0_45, %c0_46] : memref<32x64xf32, #tpu.memory_space<vmem>>, vector<32x64xf32>
    %cst_47 = arith.constant dense<0.000000e+00> : vector<16x64xf32>
    %152 = tpu.matmul %150, %151, %cst_47 {dimension_numbers = #tpu.dot_dimension_numbers<[1], [0], [0], [1], [0, 0, 1, 1], [], []>} : vector<16x32xf32>, vector<32x64xf32>, vector<16x64xf32> -> vector<16x64xf32>
    %c0_48 = arith.constant 0 : index
    %c0_49 = arith.constant 0 : index
    %153 = vector.load %arg5[%c0_48, %c0_49] : memref<1x64xf32, #tpu.memory_space<vmem>>, vector<1x64xf32>
    %154 = vector.broadcast %153 : vector<1x64xf32> to vector<16x64xf32>
    %155 = arith.addf %152, %154 : vector<16x64xf32>
    %cst_50 = arith.constant 0.000000e+00 : f32
    %156 = vector.broadcast %cst_50 : f32 to vector<16x64xf32>
    %157 = arith.maximumf %155, %156 : vector<16x64xf32>
    %c0_51 = arith.constant 0 : index
    %c0_52 = arith.constant 0 : index
    %158 = vector.load %arg6[%c0_51, %c0_52] : memref<64x32xf32, #tpu.memory_space<vmem>>, vector<64x32xf32>
    %cst_53 = arith.constant dense<0.000000e+00> : vector<16x32xf32>
    %159 = tpu.matmul %157, %158, %cst_53 {dimension_numbers = #tpu.dot_dimension_numbers<[1], [0], [0], [1], [0, 0, 1, 1], [], []>} : vector<16x64xf32>, vector<64x32xf32>, vector<16x32xf32> -> vector<16x32xf32>
    %c0_54 = arith.constant 0 : index
    %c0_55 = arith.constant 0 : index
    %160 = vector.load %arg7[%c0_54, %c0_55] : memref<1x32xf32, #tpu.memory_space<vmem>>, vector<1x32xf32>
    %161 = vector.broadcast %160 : vector<1x32xf32> to vector<16x32xf32>
    %162 = arith.addf %159, %161 : vector<16x32xf32>
    %163 = arith.addf %123, %162 : vector<16x32xf32>
    %c0_56 = arith.constant 0 : index
    %c0_57 = arith.constant 0 : index
    %164 = vector.load %arg9[%c0_56, %c0_57] : memref<16x32xf32, #tpu.memory_space<vmem>>, vector<16x32xf32>
    tpu.vector_store %arg9[%c0_56, %c0_57], %163 {strides = array<i32>} : memref<16x32xf32, #tpu.memory_space<vmem>>, vector<16x32xf32>,
    return
  }
}

</mosaic_0001>

<llo_original>
// kernel: _encoder_block.1
$region0: #{_encoder_block.1}
  #allocation0 [shape = 'u32[]', space=smem, size = 0x4, offset = 0x4, fixed_abs, tag = 'smem constant byte address 0x4 - core index']
  #allocation1 [shape = 'u32[144,128]{1,0:T(1,128)}', space=vmem, size = 0x12000, scoped, tag = 'internal scratch']
  %s0 = inlined_call_operand.hbm [shape: f32[16,32], index: 0, kind: input, shape index: {}]
  %s1 = inlined_call_operand.vmem [shape: f32[32,192], index: 1, kind: input, shape index: {}]
  %s2 = inlined_call_operand.vmem [shape: f32[1,192], index: 2, kind: input, shape index: {}]
  %s3 = inlined_call_operand.vmem [shape: f32[1,32], index: 3, kind: input, shape index: {}]
  %s4 = inlined_call_operand.vmem [shape: f32[32,64], index: 4, kind: input, shape index: {}]
  %s5 = inlined_call_operand.vmem [shape: f32[1,64], index: 5, kind: input, shape index: {}]
  %s6 = inlined_call_operand.vmem [shape: f32[64,32], index: 6, kind: input, shape index: {}]
  %s7 = inlined_call_operand.vmem [shape: f32[1,32], index: 7, kind: input, shape index: {}]
  %s8 = inlined_call_operand.vmem [shape: f32[1,4], index: 8, kind: input, shape index: {}]
  %s9 = inlined_call_operand.hbm [shape: f32[16,32], index: 9, kind: output, shape index: {}]
  %s10 = sld [smem:[#allocation0]]
  $region54: #{_encoder_block.1} parent=0
    _
  %s12 = ssub.s32 1, %s10
  %s13 = scalar_select 0, %s12, %s10
  $region1: #{_encoder_block.1} parent=0
    #allocation2 [shape = 'u8[8192]{0}', space=vmem, size = 0x2000, scoped, tag = 'input window, operand 0, single buffered']
    #allocation3 [shape = 's32[1]{0}', space=sflag, size = 0x4, scoped, tag = 'scoped memory for _encoder_block.1']
    #allocation4 [shape = 's32[1]{0}', space=sflag, size = 0x4, scoped, tag = 'scoped memory for _encoder_block.1']
    #allocation5 [shape = 's32[1]{0}', space=sflag, size = 0x4, scoped, tag = 'scoped memory for _encoder_block.1']
    #allocation6 [shape = 'u8[512]{0}', space=smem, size = 0x200, scoped, tag = 'input window, operand 8, single buffered']
    #allocation7 [shape = 'u8[8192]{0}', space=vmem, size = 0x2000, scoped, tag = 'output window, operand 0, single buffered']
    %14 = vsyncpa [#allocation3], 0
    %15 = vsyncpa [#allocation5], 0
    %16 = vsyncpa [#allocation4], 0
    // Predicated region
    $region2: #{_encoder_block.1} parent=1 // pred_check
      _
    $region3: #{_encoder_block.1} parent=1 // pred_check_branch
      %18 = sbr.rel (0) target = $region5
    $region4: #{_encoder_block.1} parent=1 // pred_region
      %s20 = ssub.s32 256, 256
      %21 = vsyncadd [#allocation3], %s20
      %s22 = sshll.u32 [#allocation2], 4
      %s23 = int_to_ptr.vmem [resolvable:$true] %s22
      %28 = dma.hbm_to_vmem [thread:$0]  %s0, 256, %s23, [#allocation3], 128, 128, 8
    $region5: #{_encoder_block.1} parent=1 // pred_fallthru
      _
    // Predicated region
    $region6: #{_encoder_block.1} parent=1 // pred_check
      _
    $region7: #{_encoder_block.1} parent=1 // pred_check_branch
      %30 = sbr.rel (0) target = $region9
    $region8: #{_encoder_block.1} parent=1 // pred_region
      _
    $region9: #{_encoder_block.1} parent=1 // pred_fallthru
      _
    // Predicated region
    $region10: #{_encoder_block.1} parent=1 // pred_check
      _
    $region11: #{_encoder_block.1} parent=1 // pred_check_branch
      %32 = sbr.rel (0) target = $region13
    $region12: #{_encoder_block.1} parent=1 // pred_region
      _
    $region13: #{_encoder_block.1} parent=1 // pred_fallthru
      _
    // Predicated region
    $region14: #{_encoder_block.1} parent=1 // pred_check
      _
    $region15: #{_encoder_block.1} parent=1 // pred_check_branch
      %34 = sbr.rel (0) target = $region17
    $region16: #{_encoder_block.1} parent=1 // pred_region
      _
    $region17: #{_encoder_block.1} parent=1 // pred_fallthru
      _
    // Predicated region
    $region18: #{_encoder_block.1} parent=1 // pred_check
      _
    $region19: #{_encoder_block.1} parent=1 // pred_check_branch
      %36 = sbr.rel (0) target = $region21
    $region20: #{_encoder_block.1} parent=1 // pred_region
      _
    $region21: #{_encoder_block.1} parent=1 // pred_fallthru
      _
    // Predicated region
    $region22: #{_encoder_block.1} parent=1 // pred_check
      _
    $region23: #{_encoder_block.1} parent=1 // pred_check_branch
      %38 = sbr.rel (0) target = $region25
    $region24: #{_encoder_block.1} parent=1 // pred_region
      _
    $region25: #{_encoder_block.1} parent=1 // pred_fallthru
      _
    // Predicated region
    $region26: #{_encoder_block.1} parent=1 // pred_check
      _
    $region27: #{_encoder_block.1} parent=1 // pred_check_branch
      %40 = sbr.rel (0) target = $region29
    $region28: #{_encoder_block.1} parent=1 // pred_region
      _
    $region29: #{_encoder_block.1} parent=1 // pred_fallthru
      _
    // Predicated region
    $region30: #{_encoder_block.1} parent=1 // pred_check
      _
    $region31: #{_encoder_block.1} parent=1 // pred_check_branch
      %42 = sbr.rel (0) target = $region33
    $region32: #{_encoder_block.1} parent=1 // pred_region
      _
    $region33: #{_encoder_block.1} parent=1 // pred_fallthru
      _
    // Predicated region
    $region34: #{_encoder_block.1} parent=1 // pred_check
      _
    $region35: #{_encoder_block.1} parent=1 // pred_check_branch
      %44 = sbr.rel (0) target = $region37
    $region36: #{_encoder_block.1} parent=1 // pred_region
      %s46 = ssub.s32 16, 16
      %47 = vsyncadd [#allocation5], %s46
      %s49 = sshll.u32 %s8, 4
      %s50 = int_to_ptr.vmem [resolvable:$true] %s49
      %52 = dma.vmem_to_smem %s50, 16, [#allocation6], [#allocation5]
    $region37: #{_encoder_block.1} parent=1 // pred_fallthru
      _
    // Predicated region
    $region38: #{_encoder_block.1} parent=1 // pred_check
      _
    $region39: #{_encoder_block.1} parent=1 // pred_check_branch
      %54 = sbr.rel (0) target = $region41
    $region40: #{_encoder_block.1} parent=1 // pred_region
      %55 = dma.done [#allocation3], 256
    $region41: #{_encoder_block.1} parent=1 // pred_fallthru
      _
    // Predicated region
    $region42: #{_encoder_block.1} parent=1 // pred_check
      _
    $region43: #{_encoder_block.1} parent=1 // pred_check_branch
      %57 = sbr.rel (0) target = $region45
    $region44: #{_encoder_block.1} parent=1 // pred_region
      %58 = dma.done [#allocation5], 16
    $region45: #{_encoder_block.1} parent=1 // pred_fallthru
      _
    %59 = sfence
    %v60 = vld [vmem:[#allocation2] sm:$0xff]
    %v61 = vld [vmem:[#allocation2 + $0x8] sm:$0xff]
    %s62 = sld [smem:[#allocation6]]
    %s63 = sld [smem:[#allocation6 + $0x1]]
    %s64 = sld [smem:[#allocation6 + $0x2]]
    %s65 = sld [smem:[#allocation6 + $0x3]]
    %vm66 = vcmask 261120
    %v67 = vsel %vm66, %v60, 0.0
    %68 = vadd.xlane.f32.xlu0 %v67
    %v69 = vpop.xlane.xlu0 %68
    %v70 = vsel %vm66, %v61, 0.0
    %71 = vadd.xlane.f32.xlu0 %v70
    %v72 = vpop.xlane.xlu0 %71
    %v73 = vrcp.pop 32.0
    %v74 = vmul.f32 %v69, %v73
    %v75 = vmul.f32 %v72, %v73
    %v76 = vsub.f32 %v60, %v74
    %v77 = vsub.f32 %v61, %v75
    %v78 = vmul.f32 %v76, %v76
    %v79 = vmul.f32 %v77, %v77
    %v80 = vsel %vm66, %v78, 0.0
    %81 = vadd.xlane.f32.xlu0 %v80
    %v82 = vpop.xlane.xlu0 %81
    %v83 = vsel %vm66, %v79, 0.0
    %84 = vadd.xlane.f32.xlu0 %v83
    %v85 = vpop.xlane.xlu0 %84
    %v86 = vmul.f32 %v82, 0.032258064
    %v87 = vmul.f32 %v85, 0.032258064
    %v88 = vrsqrt.pop %v86
    %v89 = vmul.f32 %v86, %v88
    %vm90 = vcmp.eq.f32.partialorder %v86, inf
    %v91 = vsel %vm90, %v86, %v89
    %vm92 = vcmp.eq.f32.partialorder %v86, 0.0
    %v93 = vand.u32 %v86, 2147483648
    %v94 = vsel %vm92, %v93, %v91
    %v95 = vrsqrt.pop %v87
    %v96 = vmul.f32 %v87, %v95
    %vm97 = vcmp.eq.f32.partialorder %v87, inf
    %v98 = vsel %vm97, %v87, %v96
    %vm99 = vcmp.eq.f32.partialorder %v87, 0.0
    %v100 = vand.u32 %v87, 2147483648
    %v101 = vsel %vm99, %v100, %v98
    %v102 = vadd.f32 %v94, 1e-06
    %v103 = vadd.f32 %v101, 1e-06
    %v104 = vrcp.pop %v102
    %v105 = vrcp.pop %v103
    %v106 = vmul.f32 %v102, %v104
    %v107 = vmul.f32 %v103, %v105
    %v108 = vsub.f32 2.0, %v106
    %v109 = vsub.f32 2.0, %v107
    %v110 = vmul.f32 %v104, %v108
    %v111 = vmul.f32 %v105, %v109
    %v112 = vstv %s62
    %v113 = vmul.f32 %v112, %v110
    %v114 = vmul.f32 %v112, %v111
    %v115 = vmul.f32 %v76, %v113
    %v116 = vmul.f32 %v77, %v114
    %v117 = vstv %s63
    %v118 = vadd.f32 %v115, %v117
    %v119 = vadd.f32 %v116, %v117
    %v120 = vld [vmem:[%s1] sm:$0xff]
    %v121 = vld [vmem:[%s1 + $0x8] sm:$0xff]
    %v122 = vld [vmem:[%s1 + $0x10] sm:$0xff]
    %v123 = vld [vmem:[%s1 + $0x18] sm:$0xff]
    %v124 = vld [vmem:[%s1 + $0x20] sm:$0xff]
    %v125 = vld [vmem:[%s1 + $0x28] sm:$0xff]
    %v126 = vld [vmem:[%s1 + $0x30] sm:$0xff]
    %v127 = vld [vmem:[%s1 + $0x38] sm:$0xff]
    %v128 = vld [vmem:[%s2] sm:$0x3]
    %v130 = vlaneseq
    %v131 = vshrl.u32 %v130, 7
    %v132 = vsub.s32 0, %v131
    %v133 = vrot.slane %v128, %v132
    %v134 = vlaneseq
    %v135 = vshrl.u32 %v134, 7
    %v136 = vsub.s32 1, %v135
    %v137 = vrot.slane %v128, %v136
    %v141 = vsel %vm66, %v118, 0
    %v144 = vsel %vm66, %v119, 0
    %146 = vmatprep.subr.mxu0 0.0
    %147 = vmatpush1.msra.mxu0 0.0
    %148 = vmatprep.subr.mxu0 0.0
    %149 = vmatpush1.msra.mxu0 0.0
    %150 = vmatprep.subr.mxu0 0.0
    %151 = vmatpush1.msra.mxu0 0.0
    %152 = vmatprep.subr.mxu0 0.0
    %153 = vmatpush1.msra.mxu0 0.0
    %154 = vmatprep.subr.mxu0 0.0
    %155 = vmatpush1.msra.mxu0 0.0
    %156 = vmatprep.subr.mxu0 0.0
    %157 = vmatpush1.msra.mxu0 0.0
    %158 = vmatprep.subr.mxu0 0.0
    %159 = vmatpush1.msra.mxu0 0.0
    %160 = vmatprep.subr.mxu0 0.0
    %161 = vmatpush1.msra.mxu0 0.0
    %162 = vmatprep.subr.mxu0 0.0
    %163 = vmatpush1.msra.mxu0 0.0
    %164 = vmatprep.subr.mxu0 0.0
    %165 = vmatpush1.msra.mxu0 0.0
    %166 = vmatprep.subr.mxu0 0.0
    %167 = vmatpush1.msra.mxu0 0.0
    %168 = vmatprep.subr.mxu0 0.0
    %169 = vmatpush1.msra.mxu0 0.0
    %170 = vmatprep.subr.mxu0 %v127
    %171 = vmatpush1.msra.mxu0 %v126
    %172 = vmatprep.subr.mxu0 %v125
    %173 = vmatpush1.msra.mxu0 %v124
    %174 = vmatprep.subr.mxu0 %v123
    %175 = vmatpush1.msra.mxu0 %v122
    %176 = vmatprep.subr.mxu0 %v121
    %177 = vmatpush1.msra.mxu0 %v120
    %178 = vmatprep.subr.mxu0 0.0
    %179 = vmatpush2.msra.mxu0 0.0
    %180 = vmatprep.subr.mxu0 0.0
    %181 = vmatpush2.msra.mxu0 0.0
    %182 = vmatprep.subr.mxu0 0.0
    %183 = vmatpush2.msra.mxu0 0.0
    %184 = vmatprep.subr.mxu0 0.0
    %185 = vmatpush2.msra.mxu0 0.0
    %186 = vmatprep.subr.mxu0 0.0
    %187 = vmatpush2.msra.mxu0 0.0
    %188 = vmatprep.subr.mxu0 0.0
    %189 = vmatpush2.msra.mxu0 0.0
    %190 = vmatprep.subr.mxu0 0.0
    %191 = vmatpush2.msra.mxu0 0.0
    %192 = vmatprep.subr.mxu0 0.0
    %193 = vmatpush2.msra.mxu0 0.0
    %194 = vmatprep.subr.mxu0 0.0
    %195 = vmatpush2.msra.mxu0 0.0
    %196 = vmatprep.subr.mxu0 0.0
    %197 = vmatpush2.msra.mxu0 0.0
    %198 = vmatprep.subr.mxu0 0.0
    %199 = vmatpush2.msra.mxu0 0.0
    %200 = vmatprep.subr.mxu0 0.0
    %201 = vmatpush2.msra.mxu0 0.0
    %202 = vmatprep.subr.mxu0 0.0
    %203 = vmatpush2.msra.mxu0 0.0
    %204 = vmatprep.subr.mxu0 0.0
    %205 = vmatpush2.msra.mxu0 0.0
    %206 = vmatprep.subr.mxu0 0.0
    %207 = vmatpush2.msra.mxu0 0.0
    %208 = vmatprep.subr.mxu0 0.0
    %209 = vmatpush2.msra.mxu0 0.0
    %210 = vmatprep.mubr.f32.mxu0 0.0
    %211 = vmatmul.mubr.f32.gmra.mxu0 %v141
    %v212 = vpop.f32.mrf.mxu0
    %v213 = vadd.f32 %v133, %v212
    %v214 = vpop.f32.mrf.mxu0
    %v215 = vadd.f32 %v137, %v214
    %216 = vmatprep.mubr.f32.mxu0 0.0
    %217 = vmatmul.mubr.f32.gmra.mxu0 %v144
    %v218 = vpop.f32.mrf.mxu0
    %v219 = vadd.f32 %v133, %v218
    %v220 = vpop.f32.mrf.mxu0
    %v221 = vadd.f32 %v137, %v220
    %222 = vdwg.mxu0
    %224 = vrot.lane.b32.xlu0 %v215, 96
    %v225 = vpop.permute.xlu0 %224
    %vm226 = vcmask 64512
    %v227 = vsel %vm226, %v215, 0
    %v229 = vsel %vm226, %v225, 0
    %231 = vmatprep.subr.mxu0 0.0
    %232 = vmatpush1.xpose.msra.mxu0 0.0
    %233 = vmatprep.subr.mxu0 0.0
    %234 = vmatpush1.xpose.msra.mxu0 0.0
    %235 = vmatprep.subr.mxu0 0.0
    %236 = vmatpush1.xpose.msra.mxu0 0.0
    %237 = vmatprep.subr.mxu0 0.0
    %238 = vmatpush1.xpose.msra.mxu0 0.0
    %239 = vmatprep.subr.mxu0 0.0
    %240 = vmatpush1.xpose.msra.mxu0 0.0
    %241 = vmatprep.subr.mxu0 0.0
    %242 = vmatpush1.xpose.msra.mxu0 0.0
    %243 = vmatprep.subr.mxu0 0.0
    %244 = vmatpush1.xpose.msra.mxu0 0.0
    %245 = vmatprep.subr.mxu0 0.0
    %246 = vmatpush1.xpose.msra.mxu0 0.0
    %247 = vmatprep.subr.mxu0 0.0
    %248 = vmatpush1.xpose.msra.mxu0 0.0
    %249 = vmatprep.subr.mxu0 0.0
    %250 = vmatpush1.xpose.msra.mxu0 0.0
    %251 = vmatprep.subr.mxu0 0.0
    %252 = vmatpush1.xpose.msra.mxu0 0.0
    %253 = vmatprep.subr.mxu0 0.0
    %254 = vmatpush1.xpose.msra.mxu0 0.0
    %255 = vmatprep.subr.mxu0 0.0
    %256 = vmatpush1.xpose.msra.mxu0 0.0
    %257 = vmatprep.subr.mxu0 0.0
    %258 = vmatpush1.xpose.msra.mxu0 0.0
    %259 = vmatprep.subr.mxu0 0.0
    %260 = vmatpush1.xpose.msra.mxu0 0.0
    %261 = vmatprep.subr.mxu0 0.0
    %262 = vmatpush1.xpose.msra.mxu0 %v229
    %263 = vmatprep.subr.mxu0 0.0
    %264 = vmatpush2.xpose.msra.mxu0 0.0
    %265 = vmatprep.subr.mxu0 0.0
    %266 = vmatpush2.xpose.msra.mxu0 0.0
    %267 = vmatprep.subr.mxu0 0.0
    %268 = vmatpush2.xpose.msra.mxu0 0.0
    %269 = vmatprep.subr.mxu0 0.0
    %270 = vmatpush2.xpose.msra.mxu0 0.0
    %271 = vmatprep.subr.mxu0 0.0
    %272 = vmatpush2.xpose.msra.mxu0 0.0
    %273 = vmatprep.subr.mxu0 0.0
    %274 = vmatpush2.xpose.msra.mxu0 0.0
    %275 = vmatprep.subr.mxu0 0.0
    %276 = vmatpush2.xpose.msra.mxu0 0.0
    %277 = vmatprep.subr.mxu0 0.0
    %278 = vmatpush2.xpose.msra.mxu0 0.0
    %279 = vmatprep.subr.mxu0 0.0
    %280 = vmatpush2.xpose.msra.mxu0 0.0
    %281 = vmatprep.subr.mxu0 0.0
    %282 = vmatpush2.xpose.msra.mxu0 0.0
    %283 = vmatprep.subr.mxu0 0.0
    %284 = vmatpush2.xpose.msra.mxu0 0.0
    %285 = vmatprep.subr.mxu0 0.0
    %286 = vmatpush2.xpose.msra.mxu0 0.0
    %287 = vmatprep.subr.mxu0 0.0
    %288 = vmatpush2.xpose.msra.mxu0 0.0
    %289 = vmatprep.subr.mxu0 0.0
    %290 = vmatpush2.xpose.msra.mxu0 0.0
    %291 = vmatprep.subr.mxu0 0.0
    %292 = vmatpush2.xpose.msra.mxu0 0.0
    %293 = vmatprep.subr.mxu0 0.0
    %294 = vmatpush2.xpose.msra.mxu0 0.0
    %295 = vmatprep.mubr.f32.mxu0 0.0
    %296 = vmatmul.mubr.f32.gmra.mxu0 %v227
    %v297 = vpop.f32.mrf.mxu0
    %v298 = vadd.f32 0.0, %v297
    %v299 = vpop.f32.mrf.mxu0
    %300 = vdwg.mxu0
    %302 = vrot.lane.b32.xlu0 %v221, 96
    %v303 = vpop.permute.xlu0 %302
    %v304 = vsel %vm226, %v221, 0
    %v306 = vsel %vm226, %v303, 0
    %308 = vmatprep.subr.mxu0 0.0
    %309 = vmatpush1.xpose.msra.mxu0 0.0
    %310 = vmatprep.subr.mxu0 0.0
    %311 = vmatpush1.xpose.msra.mxu0 0.0
    %312 = vmatprep.subr.mxu0 0.0
    %313 = vmatpush1.xpose.msra.mxu0 0.0
    %314 = vmatprep.subr.mxu0 0.0
    %315 = vmatpush1.xpose.msra.mxu0 0.0
    %316 = vmatprep.subr.mxu0 0.0
    %317 = vmatpush1.xpose.msra.mxu0 0.0
    %318 = vmatprep.subr.mxu0 0.0
    %319 = vmatpush1.xpose.msra.mxu0 0.0
    %320 = vmatprep.subr.mxu0 0.0
    %321 = vmatpush1.xpose.msra.mxu0 0.0
    %322 = vmatprep.subr.mxu0 0.0
    %323 = vmatpush1.xpose.msra.mxu0 0.0
    %324 = vmatprep.subr.mxu0 0.0
    %325 = vmatpush1.xpose.msra.mxu0 0.0
    %326 = vmatprep.subr.mxu0 0.0
    %327 = vmatpush1.xpose.msra.mxu0 0.0
    %328 = vmatprep.subr.mxu0 0.0
    %329 = vmatpush1.xpose.msra.mxu0 0.0
    %330 = vmatprep.subr.mxu0 0.0
    %331 = vmatpush1.xpose.msra.mxu0 0.0
    %332 = vmatprep.subr.mxu0 0.0
    %333 = vmatpush1.xpose.msra.mxu0 0.0
    %334 = vmatprep.subr.mxu0 0.0
    %335 = vmatpush1.xpose.msra.mxu0 0.0
    %336 = vmatprep.subr.mxu0 0.0
    %337 = vmatpush1.xpose.msra.mxu0 0.0
    %338 = vmatprep.subr.mxu0 0.0
    %339 = vmatpush1.xpose.msra.mxu0 %v306
    %340 = vmatprep.subr.mxu0 0.0
    %341 = vmatpush2.xpose.msra.mxu0 0.0
    %342 = vmatprep.subr.mxu0 0.0
    %343 = vmatpush2.xpose.msra.mxu0 0.0
    %344 = vmatprep.subr.mxu0 0.0
    %345 = vmatpush2.xpose.msra.mxu0 0.0
    %346 = vmatprep.subr.mxu0 0.0
    %347 = vmatpush2.xpose.msra.mxu0 0.0
    %348 = vmatprep.subr.mxu0 0.0
    %349 = vmatpush2.xpose.msra.mxu0 0.0
    %350 = vmatprep.subr.mxu0 0.0
    %351 = vmatpush2.xpose.msra.mxu0 0.0
    %352 = vmatprep.subr.mxu0 0.0
    %353 = vmatpush2.xpose.msra.mxu0 0.0
    %354 = vmatprep.subr.mxu0 0.0
    %355 = vmatpush2.xpose.msra.mxu0 0.0
    %356 = vmatprep.subr.mxu0 0.0
    %357 = vmatpush2.xpose.msra.mxu0 0.0
    %358 = vmatprep.subr.mxu0 0.0
    %359 = vmatpush2.xpose.msra.mxu0 0.0
    %360 = vmatprep.subr.mxu0 0.0
    %361 = vmatpush2.xpose.msra.mxu0 0.0
    %362 = vmatprep.subr.mxu0 0.0
    %363 = vmatpush2.xpose.msra.mxu0 0.0
    %364 = vmatprep.subr.mxu0 0.0
    %365 = vmatpush2.xpose.msra.mxu0 0.0
    %366 = vmatprep.subr.mxu0 0.0
    %367 = vmatpush2.xpose.msra.mxu0 0.0
    %368 = vmatprep.subr.mxu0 0.0
    %369 = vmatpush2.xpose.msra.mxu0 0.0
    %370 = vmatprep.subr.mxu0 0.0
    %371 = vmatpush2.xpose.msra.mxu0 0.0
    %372 = vmatprep.mubr.f32.mxu0 0.0
    %373 = vmatmul.mubr.f32.gmra.mxu0 %v304
    %v374 = vpop.f32.mrf.mxu0
    %v375 = vadd.f32 0.0, %v374
    %v376 = vpop.f32.mrf.mxu0
    %377 = vdwg.mxu0
    %v378 = vsel %vm226, %v298, -inf
    %379 = vmax.xlane.f32.xlu0 %v378
    %v380 = vpop.xlane.xlu0 %379
    %v381 = vsel %vm226, %v375, -inf
    %382 = vmax.xlane.f32.xlu0 %v381
    %v383 = vpop.xlane.xlu0 %382
    %v384 = vsub.f32 %v298, %v380
    %v385 = vsub.f32 %v375, %v383
    %v386 = vmul.f32 %v384, 1.442695
    %v387 = vpow.pop %v386
    %v388 = vmul.f32 %v385, 1.442695
    %v389 = vpow.pop %v388
    %v390 = vsel %vm226, %v387, 0.0
    %391 = vadd.xlane.f32.xlu0 %v390
    %v392 = vpop.xlane.xlu0 %391
    %v393 = vsel %vm226, %v389, 0.0
    %394 = vadd.xlane.f32.xlu0 %v393
    %v395 = vpop.xlane.xlu0 %394
    %v396 = vrcp.pop %v392
    %v397 = vrcp.pop %v395
    %v398 = vmul.f32 %v392, %v396
    %v399 = vmul.f32 %v395, %v397
    %v400 = vsub.f32 2.0, %v398
    %v401 = vsub.f32 2.0, %v399
    %v402 = vmul.f32 %v396, %v400
    %v403 = vmul.f32 %v397, %v401
    %v404 = vmul.f32 %v387, %v402
    %v405 = vmul.f32 %v389, %v403
    %406 = vrot.lane.b32.xlu0 %v215, 120
    %v407 = vpop.permute.xlu0 %406
    %408 = vrot.lane.b32.xlu0 %v215, 88
    %v409 = vpop.permute.xlu0 %408
    %v410 = vsel %vm226, %v407, 0
    %v412 = vsel %vm226, %v409, 0
    %414 = vmatprep.subr.mxu0 0.0
    %415 = vmatpush1.xpose.msra.mxu0 0.0
    %416 = vmatprep.subr.mxu0 0.0
    %417 = vmatpush1.xpose.msra.mxu0 0.0
    %418 = vmatprep.subr.mxu0 0.0
    %419 = vmatpush1.xpose.msra.mxu0 0.0
    %420 = vmatprep.subr.mxu0 0.0
    %421 = vmatpush1.xpose.msra.mxu0 0.0
    %422 = vmatprep.subr.mxu0 0.0
    %423 = vmatpush1.xpose.msra.mxu0 0.0
    %424 = vmatprep.subr.mxu0 0.0
    %425 = vmatpush1.xpose.msra.mxu0 0.0
    %426 = vmatprep.subr.mxu0 0.0
    %427 = vmatpush1.xpose.msra.mxu0 0.0
    %428 = vmatprep.subr.mxu0 0.0
    %429 = vmatpush1.xpose.msra.mxu0 0.0
    %430 = vmatprep.subr.mxu0 0.0
    %431 = vmatpush1.xpose.msra.mxu0 0.0
    %432 = vmatprep.subr.mxu0 0.0
    %433 = vmatpush1.xpose.msra.mxu0 0.0
    %434 = vmatprep.subr.mxu0 0.0
    %435 = vmatpush1.xpose.msra.mxu0 0.0
    %436 = vmatprep.subr.mxu0 0.0
    %437 = vmatpush1.xpose.msra.mxu0 0.0
    %438 = vmatprep.subr.mxu0 0.0
    %439 = vmatpush1.xpose.msra.mxu0 0.0
    %440 = vmatprep.subr.mxu0 0.0
    %441 = vmatpush1.xpose.msra.mxu0 0.0
    %442 = vmatprep.subr.mxu0 0.0
    %443 = vmatpush1.xpose.msra.mxu0 0.0
    %444 = vmatprep.subr.mxu0 0.0
    %445 = vmatpush1.xpose.msra.mxu0 %v412
    %446 = vmatprep.subr.mxu0 0.0
    %447 = vmatpush2.xpose.msra.mxu0 0.0
    %448 = vmatprep.subr.mxu0 0.0
    %449 = vmatpush2.xpose.msra.mxu0 0.0
    %450 = vmatprep.subr.mxu0 0.0
    %451 = vmatpush2.xpose.msra.mxu0 0.0
    %452 = vmatprep.subr.mxu0 0.0
    %453 = vmatpush2.xpose.msra.mxu0 0.0
    %454 = vmatprep.subr.mxu0 0.0
    %455 = vmatpush2.xpose.msra.mxu0 0.0
    %456 = vmatprep.subr.mxu0 0.0
    %457 = vmatpush2.xpose.msra.mxu0 0.0
    %458 = vmatprep.subr.mxu0 0.0
    %459 = vmatpush2.xpose.msra.mxu0 0.0
    %460 = vmatprep.subr.mxu0 0.0
    %461 = vmatpush2.xpose.msra.mxu0 0.0
    %462 = vmatprep.subr.mxu0 0.0
    %463 = vmatpush2.xpose.msra.mxu0 0.0
    %464 = vmatprep.subr.mxu0 0.0
    %465 = vmatpush2.xpose.msra.mxu0 0.0
    %466 = vmatprep.subr.mxu0 0.0
    %467 = vmatpush2.xpose.msra.mxu0 0.0
    %468 = vmatprep.subr.mxu0 0.0
    %469 = vmatpush2.xpose.msra.mxu0 0.0
    %470 = vmatprep.subr.mxu0 0.0
    %471 = vmatpush2.xpose.msra.mxu0 0.0
    %472 = vmatprep.subr.mxu0 0.0
    %473 = vmatpush2.xpose.msra.mxu0 0.0
    %474 = vmatprep.subr.mxu0 0.0
    %475 = vmatpush2.xpose.msra.mxu0 0.0
    %476 = vmatprep.subr.mxu0 0.0
    %477 = vmatpush2.xpose.msra.mxu0 0.0
    %478 = vmatprep.mubr.f32.mxu0 0.0
    %479 = vmatmul.mubr.f32.gmra.mxu0 %v410
    %v480 = vpop.f32.mrf.mxu0
    %v481 = vadd.f32 0.0, %v480
    %v482 = vpop.f32.mrf.mxu0
    %483 = vdwg.mxu0
    %484 = vrot.lane.b32.xlu0 %v221, 120
    %v485 = vpop.permute.xlu0 %484
    %486 = vrot.lane.b32.xlu0 %v221, 88
    %v487 = vpop.permute.xlu0 %486
    %v488 = vsel %vm226, %v485, 0
    %v490 = vsel %vm226, %v487, 0
    %492 = vmatprep.subr.mxu0 0.0
    %493 = vmatpush1.xpose.msra.mxu0 0.0
    %494 = vmatprep.subr.mxu0 0.0
    %495 = vmatpush1.xpose.msra.mxu0 0.0
    %496 = vmatprep.subr.mxu0 0.0
    %497 = vmatpush1.xpose.msra.mxu0 0.0
    %498 = vmatprep.subr.mxu0 0.0
    %499 = vmatpush1.xpose.msra.mxu0 0.0
    %500 = vmatprep.subr.mxu0 0.0
    %501 = vmatpush1.xpose.msra.mxu0 0.0
    %502 = vmatprep.subr.mxu0 0.0
    %503 = vmatpush1.xpose.msra.mxu0 0.0
    %504 = vmatprep.subr.mxu0 0.0
    %505 = vmatpush1.xpose.msra.mxu0 0.0
    %506 = vmatprep.subr.mxu0 0.0
    %507 = vmatpush1.xpose.msra.mxu0 0.0
    %508 = vmatprep.subr.mxu0 0.0
    %509 = vmatpush1.xpose.msra.mxu0 0.0
    %510 = vmatprep.subr.mxu0 0.0
    %511 = vmatpush1.xpose.msra.mxu0 0.0
    %512 = vmatprep.subr.mxu0 0.0
    %513 = vmatpush1.xpose.msra.mxu0 0.0
    %514 = vmatprep.subr.mxu0 0.0
    %515 = vmatpush1.xpose.msra.mxu0 0.0
    %516 = vmatprep.subr.mxu0 0.0
    %517 = vmatpush1.xpose.msra.mxu0 0.0
    %518 = vmatprep.subr.mxu0 0.0
    %519 = vmatpush1.xpose.msra.mxu0 0.0
    %520 = vmatprep.subr.mxu0 0.0
    %521 = vmatpush1.xpose.msra.mxu0 0.0
    %522 = vmatprep.subr.mxu0 0.0
    %523 = vmatpush1.xpose.msra.mxu0 %v490
    %524 = vmatprep.subr.mxu0 0.0
    %525 = vmatpush2.xpose.msra.mxu0 0.0
    %526 = vmatprep.subr.mxu0 0.0
    %527 = vmatpush2.xpose.msra.mxu0 0.0
    %528 = vmatprep.subr.mxu0 0.0
    %529 = vmatpush2.xpose.msra.mxu0 0.0
    %530 = vmatprep.subr.mxu0 0.0
    %531 = vmatpush2.xpose.msra.mxu0 0.0
    %532 = vmatprep.subr.mxu0 0.0
    %533 = vmatpush2.xpose.msra.mxu0 0.0
    %534 = vmatprep.subr.mxu0 0.0
    %535 = vmatpush2.xpose.msra.mxu0 0.0
    %536 = vmatprep.subr.mxu0 0.0
    %537 = vmatpush2.xpose.msra.mxu0 0.0
    %538 = vmatprep.subr.mxu0 0.0
    %539 = vmatpush2.xpose.msra.mxu0 0.0
    %540 = vmatprep.subr.mxu0 0.0
    %541 = vmatpush2.xpose.msra.mxu0 0.0
    %542 = vmatprep.subr.mxu0 0.0
    %543 = vmatpush2.xpose.msra.mxu0 0.0
    %544 = vmatprep.subr.mxu0 0.0
    %545 = vmatpush2.xpose.msra.mxu0 0.0
    %546 = vmatprep.subr.mxu0 0.0
    %547 = vmatpush2.xpose.msra.mxu0 0.0
    %548 = vmatprep.subr.mxu0 0.0
    %549 = vmatpush2.xpose.msra.mxu0 0.0
    %550 = vmatprep.subr.mxu0 0.0
    %551 = vmatpush2.xpose.msra.mxu0 0.0
    %552 = vmatprep.subr.mxu0 0.0
    %553 = vmatpush2.xpose.msra.mxu0 0.0
    %554 = vmatprep.subr.mxu0 0.0
    %555 = vmatpush2.xpose.msra.mxu0 0.0
    %556 = vmatprep.mubr.f32.mxu0 0.0
    %557 = vmatmul.mubr.f32.gmra.mxu0 %v488
    %v558 = vpop.f32.mrf.mxu0
    %v559 = vadd.f32 0.0, %v558
    %v560 = vpop.f32.mrf.mxu0
    %561 = vdwg.mxu0
    %v562 = vsel %vm226, %v481, -inf
    %563 = vmax.xlane.f32.xlu0 %v562
    %v564 = vpop.xlane.xlu0 %563
    %v565 = vsel %vm226, %v559, -inf
    %566 = vmax.xlane.f32.xlu0 %v565
    %v567 = vpop.xlane.xlu0 %566
    %v568 = vsub.f32 %v481, %v564
    %v569 = vsub.f32 %v559, %v567
    %v570 = vmul.f32 %v568, 1.442695
    %v571 = vpow.pop %v570
    %v572 = vmul.f32 %v569, 1.442695
    %v573 = vpow.pop %v572
    %v574 = vsel %vm226, %v571, 0.0
    %575 = vadd.xlane.f32.xlu0 %v574
    %v576 = vpop.xlane.xlu0 %575
    %v577 = vsel %vm226, %v573, 0.0
    %578 = vadd.xlane.f32.xlu0 %v577
    %v579 = vpop.xlane.xlu0 %578
    %v580 = vrcp.pop %v576
    %v581 = vrcp.pop %v579
    %v582 = vmul.f32 %v576, %v580
    %v583 = vmul.f32 %v579, %v581
    %v584 = vsub.f32 2.0, %v582
    %v585 = vsub.f32 2.0, %v583
    %v586 = vmul.f32 %v580, %v584
    %v587 = vmul.f32 %v581, %v585
    %v588 = vmul.f32 %v571, %v586
    %v589 = vmul.f32 %v573, %v587
    %591 = vrot.lane.b32.xlu0 %v213, 96
    %v592 = vpop.permute.xlu0 %591
    %v595 = vsel %vm226, %v588, 0
    %597 = vmatprep.subr.mxu0 0.0
    %598 = vmatpush1.msra.mxu0 0.0
    %599 = vmatprep.subr.mxu0 0.0
    %600 = vmatpush1.msra.mxu0 0.0
    %601 = vmatprep.subr.mxu0 0.0
    %602 = vmatpush1.msra.mxu0 0.0
    %603 = vmatprep.subr.mxu0 0.0
    %604 = vmatpush1.msra.mxu0 0.0
    %605 = vmatprep.subr.mxu0 0.0
    %606 = vmatpush1.msra.mxu0 0.0
    %607 = vmatprep.subr.mxu0 0.0
    %608 = vmatpush1.msra.mxu0 0.0
    %609 = vmatprep.subr.mxu0 0.0
    %610 = vmatpush1.msra.mxu0 0.0
    %611 = vmatprep.subr.mxu0 0.0
    %612 = vmatpush1.msra.mxu0 0.0
    %613 = vmatprep.subr.mxu0 0.0
    %614 = vmatpush1.msra.mxu0 0.0
    %615 = vmatprep.subr.mxu0 0.0
    %616 = vmatpush1.msra.mxu0 0.0
    %617 = vmatprep.subr.mxu0 0.0
    %618 = vmatpush1.msra.mxu0 0.0
    %619 = vmatprep.subr.mxu0 0.0
    %620 = vmatpush1.msra.mxu0 0.0
    %621 = vmatprep.subr.mxu0 0.0
    %622 = vmatpush1.msra.mxu0 0.0
    %623 = vmatprep.subr.mxu0 0.0
    %624 = vmatpush1.msra.mxu0 0.0
    %625 = vmatprep.subr.mxu0 0.0
    %626 = vmatpush1.msra.mxu0 0.0
    %627 = vmatprep.subr.mxu0 0.0
    %628 = vmatpush1.msra.mxu0 %v592
    %629 = vmatprep.subr.mxu0 0.0
    %630 = vmatpush2.msra.mxu0 0.0
    %631 = vmatprep.subr.mxu0 0.0
    %632 = vmatpush2.msra.mxu0 0.0
    %633 = vmatprep.subr.mxu0 0.0
    %634 = vmatpush2.msra.mxu0 0.0
    %635 = vmatprep.subr.mxu0 0.0
    %636 = vmatpush2.msra.mxu0 0.0
    %637 = vmatprep.subr.mxu0 0.0
    %638 = vmatpush2.msra.mxu0 0.0
    %639 = vmatprep.subr.mxu0 0.0
    %640 = vmatpush2.msra.mxu0 0.0
    %641 = vmatprep.subr.mxu0 0.0
    %642 = vmatpush2.msra.mxu0 0.0
    %643 = vmatprep.subr.mxu0 0.0
    %644 = vmatpush2.msra.mxu0 0.0
    %645 = vmatprep.subr.mxu0 0.0
    %646 = vmatpush2.msra.mxu0 0.0
    %647 = vmatprep.subr.mxu0 0.0
    %648 = vmatpush2.msra.mxu0 0.0
    %649 = vmatprep.subr.mxu0 0.0
    %650 = vmatpush2.msra.mxu0 0.0
    %651 = vmatprep.subr.mxu0 0.0
    %652 = vmatpush2.msra.mxu0 0.0
    %653 = vmatprep.subr.mxu0 0.0
    %654 = vmatpush2.msra.mxu0 0.0
    %655 = vmatprep.subr.mxu0 0.0
    %656 = vmatpush2.msra.mxu0 0.0
    %657 = vmatprep.subr.mxu0 0.0
    %658 = vmatpush2.msra.mxu0 0.0
    %659 = vmatprep.subr.mxu0 0.0
    %660 = vmatpush2.msra.mxu0 0.0
    %661 = vmatprep.mubr.f32.mxu0 0.0
    %662 = vmatmul.mubr.f32.gmra.mxu0 %v595
    %v663 = vpop.f32.mrf.mxu0
    %v664 = vadd.f32 0.0, %v663
    %v665 = vpop.f32.mrf.mxu0
    %666 = vdwg.mxu0
    %668 = vrot.lane.b32.xlu0 %v219, 96
    %v669 = vpop.permute.xlu0 %668
    %v672 = vsel %vm226, %v589, 0
    %674 = vmatprep.subr.mxu0 0.0
    %675 = vmatpush1.msra.mxu0 0.0
    %676 = vmatprep.subr.mxu0 0.0
    %677 = vmatpush1.msra.mxu0 0.0
    %678 = vmatprep.subr.mxu0 0.0
    %679 = vmatpush1.msra.mxu0 0.0
    %680 = vmatprep.subr.mxu0 0.0
    %681 = vmatpush1.msra.mxu0 0.0
    %682 = vmatprep.subr.mxu0 0.0
    %683 = vmatpush1.msra.mxu0 0.0
    %684 = vmatprep.subr.mxu0 0.0
    %685 = vmatpush1.msra.mxu0 0.0
    %686 = vmatprep.subr.mxu0 0.0
    %687 = vmatpush1.msra.mxu0 0.0
    %688 = vmatprep.subr.mxu0 0.0
    %689 = vmatpush1.msra.mxu0 0.0
    %690 = vmatprep.subr.mxu0 0.0
    %691 = vmatpush1.msra.mxu0 0.0
    %692 = vmatprep.subr.mxu0 0.0
    %693 = vmatpush1.msra.mxu0 0.0
    %694 = vmatprep.subr.mxu0 0.0
    %695 = vmatpush1.msra.mxu0 0.0
    %696 = vmatprep.subr.mxu0 0.0
    %697 = vmatpush1.msra.mxu0 0.0
    %698 = vmatprep.subr.mxu0 0.0
    %699 = vmatpush1.msra.mxu0 0.0
    %700 = vmatprep.subr.mxu0 0.0
    %701 = vmatpush1.msra.mxu0 0.0
    %702 = vmatprep.subr.mxu0 0.0
    %703 = vmatpush1.msra.mxu0 0.0
    %704 = vmatprep.subr.mxu0 0.0
    %705 = vmatpush1.msra.mxu0 %v669
    %706 = vmatprep.subr.mxu0 0.0
    %707 = vmatpush2.msra.mxu0 0.0
    %708 = vmatprep.subr.mxu0 0.0
    %709 = vmatpush2.msra.mxu0 0.0
    %710 = vmatprep.subr.mxu0 0.0
    %711 = vmatpush2.msra.mxu0 0.0
    %712 = vmatprep.subr.mxu0 0.0
    %713 = vmatpush2.msra.mxu0 0.0
    %714 = vmatprep.subr.mxu0 0.0
    %715 = vmatpush2.msra.mxu0 0.0
    %716 = vmatprep.subr.mxu0 0.0
    %717 = vmatpush2.msra.mxu0 0.0
    %718 = vmatprep.subr.mxu0 0.0
    %719 = vmatpush2.msra.mxu0 0.0
    %720 = vmatprep.subr.mxu0 0.0
    %721 = vmatpush2.msra.mxu0 0.0
    %722 = vmatprep.subr.mxu0 0.0
    %723 = vmatpush2.msra.mxu0 0.0
    %724 = vmatprep.subr.mxu0 0.0
    %725 = vmatpush2.msra.mxu0 0.0
    %726 = vmatprep.subr.mxu0 0.0
    %727 = vmatpush2.msra.mxu0 0.0
    %728 = vmatprep.subr.mxu0 0.0
    %729 = vmatpush2.msra.mxu0 0.0
    %730 = vmatprep.subr.mxu0 0.0
    %731 = vmatpush2.msra.mxu0 0.0
    %732 = vmatprep.subr.mxu0 0.0
    %733 = vmatpush2.msra.mxu0 0.0
    %734 = vmatprep.subr.mxu0 0.0
    %735 = vmatpush2.msra.mxu0 0.0
    %736 = vmatprep.subr.mxu0 0.0
    %737 = vmatpush2.msra.mxu0 0.0
    %738 = vmatprep.mubr.f32.mxu0 0.0
    %739 = vmatmul.mubr.f32.gmra.mxu0 %v672
    %v740 = vpop.f32.mrf.mxu0
    %v741 = vadd.f32 0.0, %v740
    %v742 = vpop.f32.mrf.mxu0
    %743 = vdwg.mxu0
    %v745 = vsel %vm226, %v404, 0
    %747 = vmatprep.subr.mxu0 0.0
    %748 = vmatpush1.msra.mxu0 0.0
    %749 = vmatprep.subr.mxu0 0.0
    %750 = vmatpush1.msra.mxu0 0.0
    %751 = vmatprep.subr.mxu0 0.0
    %752 = vmatpush1.msra.mxu0 0.0
    %753 = vmatprep.subr.mxu0 0.0
    %754 = vmatpush1.msra.mxu0 0.0
    %755 = vmatprep.subr.mxu0 0.0
    %756 = vmatpush1.msra.mxu0 0.0
    %757 = vmatprep.subr.mxu0 0.0
    %758 = vmatpush1.msra.mxu0 0.0
    %759 = vmatprep.subr.mxu0 0.0
    %760 = vmatpush1.msra.mxu0 0.0
    %761 = vmatprep.subr.mxu0 0.0
    %762 = vmatpush1.msra.mxu0 0.0
    %763 = vmatprep.subr.mxu0 0.0
    %764 = vmatpush1.msra.mxu0 0.0
    %765 = vmatprep.subr.mxu0 0.0
    %766 = vmatpush1.msra.mxu0 0.0
    %767 = vmatprep.subr.mxu0 0.0
    %768 = vmatpush1.msra.mxu0 0.0
    %769 = vmatprep.subr.mxu0 0.0
    %770 = vmatpush1.msra.mxu0 0.0
    %771 = vmatprep.subr.mxu0 0.0
    %772 = vmatpush1.msra.mxu0 0.0
    %773 = vmatprep.subr.mxu0 0.0
    %774 = vmatpush1.msra.mxu0 0.0
    %775 = vmatprep.subr.mxu0 0.0
    %776 = vmatpush1.msra.mxu0 0.0
    %777 = vmatprep.subr.mxu0 0.0
    %778 = vmatpush1.msra.mxu0 %v213
    %779 = vmatprep.subr.mxu0 0.0
    %780 = vmatpush2.msra.mxu0 0.0
    %781 = vmatprep.subr.mxu0 0.0
    %782 = vmatpush2.msra.mxu0 0.0
    %783 = vmatprep.subr.mxu0 0.0
    %784 = vmatpush2.msra.mxu0 0.0
    %785 = vmatprep.subr.mxu0 0.0
    %786 = vmatpush2.msra.mxu0 0.0
    %787 = vmatprep.subr.mxu0 0.0
    %788 = vmatpush2.msra.mxu0 0.0
    %789 = vmatprep.subr.mxu0 0.0
    %790 = vmatpush2.msra.mxu0 0.0
    %791 = vmatprep.subr.mxu0 0.0
    %792 = vmatpush2.msra.mxu0 0.0
    %793 = vmatprep.subr.mxu0 0.0
    %794 = vmatpush2.msra.mxu0 0.0
    %795 = vmatprep.subr.mxu0 0.0
    %796 = vmatpush2.msra.mxu0 0.0
    %797 = vmatprep.subr.mxu0 0.0
    %798 = vmatpush2.msra.mxu0 0.0
    %799 = vmatprep.subr.mxu0 0.0
    %800 = vmatpush2.msra.mxu0 0.0
    %801 = vmatprep.subr.mxu0 0.0
    %802 = vmatpush2.msra.mxu0 0.0
    %803 = vmatprep.subr.mxu0 0.0
    %804 = vmatpush2.msra.mxu0 0.0
    %805 = vmatprep.subr.mxu0 0.0
    %806 = vmatpush2.msra.mxu0 0.0
    %807 = vmatprep.subr.mxu0 0.0
    %808 = vmatpush2.msra.mxu0 0.0
    %809 = vmatprep.subr.mxu0 0.0
    %810 = vmatpush2.msra.mxu0 0.0
    %811 = vmatprep.mubr.f32.mxu0 0.0
    %812 = vmatmul.mubr.f32.gmra.mxu0 %v745
    %v813 = vpop.f32.mrf.mxu0
    %v814 = vadd.f32 %v664, %v813
    %v815 = vpop.f32.mrf.mxu0
    %816 = vdwg.mxu0
    %v818 = vsel %vm226, %v405, 0
    %820 = vmatprep.subr.mxu0 0.0
    %821 = vmatpush1.msra.mxu0 0.0
    %822 = vmatprep.subr.mxu0 0.0
    %823 = vmatpush1.msra.mxu0 0.0
    %824 = vmatprep.subr.mxu0 0.0
    %825 = vmatpush1.msra.mxu0 0.0
    %826 = vmatprep.subr.mxu0 0.0
    %827 = vmatpush1.msra.mxu0 0.0
    %828 = vmatprep.subr.mxu0 0.0
    %829 = vmatpush1.msra.mxu0 0.0
    %830 = vmatprep.subr.mxu0 0.0
    %831 = vmatpush1.msra.mxu0 0.0
    %832 = vmatprep.subr.mxu0 0.0
    %833 = vmatpush1.msra.mxu0 0.0
    %834 = vmatprep.subr.mxu0 0.0
    %835 = vmatpush1.msra.mxu0 0.0
    %836 = vmatprep.subr.mxu0 0.0
    %837 = vmatpush1.msra.mxu0 0.0
    %838 = vmatprep.subr.mxu0 0.0
    %839 = vmatpush1.msra.mxu0 0.0
    %840 = vmatprep.subr.mxu0 0.0
    %841 = vmatpush1.msra.mxu0 0.0
    %842 = vmatprep.subr.mxu0 0.0
    %843 = vmatpush1.msra.mxu0 0.0
    %844 = vmatprep.subr.mxu0 0.0
    %845 = vmatpush1.msra.mxu0 0.0
    %846 = vmatprep.subr.mxu0 0.0
    %847 = vmatpush1.msra.mxu0 0.0
    %848 = vmatprep.subr.mxu0 0.0
    %849 = vmatpush1.msra.mxu0 0.0
    %850 = vmatprep.subr.mxu0 0.0
    %851 = vmatpush1.msra.mxu0 %v219
    %852 = vmatprep.subr.mxu0 0.0
    %853 = vmatpush2.msra.mxu0 0.0
    %854 = vmatprep.subr.mxu0 0.0
    %855 = vmatpush2.msra.mxu0 0.0
    %856 = vmatprep.subr.mxu0 0.0
    %857 = vmatpush2.msra.mxu0 0.0
    %858 = vmatprep.subr.mxu0 0.0
    %859 = vmatpush2.msra.mxu0 0.0
    %860 = vmatprep.subr.mxu0 0.0
    %861 = vmatpush2.msra.mxu0 0.0
    %862 = vmatprep.subr.mxu0 0.0
    %863 = vmatpush2.msra.mxu0 0.0
    %864 = vmatprep.subr.mxu0 0.0
    %865 = vmatpush2.msra.mxu0 0.0
    %866 = vmatprep.subr.mxu0 0.0
    %867 = vmatpush2.msra.mxu0 0.0
    %868 = vmatprep.subr.mxu0 0.0
    %869 = vmatpush2.msra.mxu0 0.0
    %870 = vmatprep.subr.mxu0 0.0
    %871 = vmatpush2.msra.mxu0 0.0
    %872 = vmatprep.subr.mxu0 0.0
    %873 = vmatpush2.msra.mxu0 0.0
    %874 = vmatprep.subr.mxu0 0.0
    %875 = vmatpush2.msra.mxu0 0.0
    %876 = vmatprep.subr.mxu0 0.0
    %877 = vmatpush2.msra.mxu0 0.0
    %878 = vmatprep.subr.mxu0 0.0
    %879 = vmatpush2.msra.mxu0 0.0
    %880 = vmatprep.subr.mxu0 0.0
    %881 = vmatpush2.msra.mxu0 0.0
    %882 = vmatprep.subr.mxu0 0.0
    %883 = vmatpush2.msra.mxu0 0.0
    %884 = vmatprep.mubr.f32.mxu0 0.0
    %885 = vmatmul.mubr.f32.gmra.mxu0 %v818
    %v886 = vpop.f32.mrf.mxu0
    %v887 = vadd.f32 %v741, %v886
    %v888 = vpop.f32.mrf.mxu0
    %889 = vdwg.mxu0
    %890 = vrot.lane.b32.xlu0 %v215, 112
    %v891 = vpop.permute.xlu0 %890
    %892 = vrot.lane.b32.xlu0 %v215, 80
    %v893 = vpop.permute.xlu0 %892
    %v894 = vsel %vm226, %v891, 0
    %v896 = vsel %vm226, %v893, 0
    %898 = vmatprep.subr.mxu0 0.0
    %899 = vmatpush1.xpose.msra.mxu0 0.0
    %900 = vmatprep.subr.mxu0 0.0
    %901 = vmatpush1.xpose.msra.mxu0 0.0
    %902 = vmatprep.subr.mxu0 0.0
    %903 = vmatpush1.xpose.msra.mxu0 0.0
    %904 = vmatprep.subr.mxu0 0.0
    %905 = vmatpush1.xpose.msra.mxu0 0.0
    %906 = vmatprep.subr.mxu0 0.0
    %907 = vmatpush1.xpose.msra.mxu0 0.0
    %908 = vmatprep.subr.mxu0 0.0
    %909 = vmatpush1.xpose.msra.mxu0 0.0
    %910 = vmatprep.subr.mxu0 0.0
    %911 = vmatpush1.xpose.msra.mxu0 0.0
    %912 = vmatprep.subr.mxu0 0.0
    %913 = vmatpush1.xpose.msra.mxu0 0.0
    %914 = vmatprep.subr.mxu0 0.0
    %915 = vmatpush1.xpose.msra.mxu0 0.0
    %916 = vmatprep.subr.mxu0 0.0
    %917 = vmatpush1.xpose.msra.mxu0 0.0
    %918 = vmatprep.subr.mxu0 0.0
    %919 = vmatpush1.xpose.msra.mxu0 0.0
    %920 = vmatprep.subr.mxu0 0.0
    %921 = vmatpush1.xpose.msra.mxu0 0.0
    %922 = vmatprep.subr.mxu0 0.0
    %923 = vmatpush1.xpose.msra.mxu0 0.0
    %924 = vmatprep.subr.mxu0 0.0
    %925 = vmatpush1.xpose.msra.mxu0 0.0
    %926 = vmatprep.subr.mxu0 0.0
    %927 = vmatpush1.xpose.msra.mxu0 0.0
    %928 = vmatprep.subr.mxu0 0.0
    %929 = vmatpush1.xpose.msra.mxu0 %v896
    %930 = vmatprep.subr.mxu0 0.0
    %931 = vmatpush2.xpose.msra.mxu0 0.0
    %932 = vmatprep.subr.mxu0 0.0
    %933 = vmatpush2.xpose.msra.mxu0 0.0
    %934 = vmatprep.subr.mxu0 0.0
    %935 = vmatpush2.xpose.msra.mxu0 0.0
    %936 = vmatprep.subr.mxu0 0.0
    %937 = vmatpush2.xpose.msra.mxu0 0.0
    %938 = vmatprep.subr.mxu0 0.0
    %939 = vmatpush2.xpose.msra.mxu0 0.0
    %940 = vmatprep.subr.mxu0 0.0
    %941 = vmatpush2.xpose.msra.mxu0 0.0
    %942 = vmatprep.subr.mxu0 0.0
    %943 = vmatpush2.xpose.msra.mxu0 0.0
    %944 = vmatprep.subr.mxu0 0.0
    %945 = vmatpush2.xpose.msra.mxu0 0.0
    %946 = vmatprep.subr.mxu0 0.0
    %947 = vmatpush2.xpose.msra.mxu0 0.0
    %948 = vmatprep.subr.mxu0 0.0
    %949 = vmatpush2.xpose.msra.mxu0 0.0
    %950 = vmatprep.subr.mxu0 0.0
    %951 = vmatpush2.xpose.msra.mxu0 0.0
    %952 = vmatprep.subr.mxu0 0.0
    %953 = vmatpush2.xpose.msra.mxu0 0.0
    %954 = vmatprep.subr.mxu0 0.0
    %955 = vmatpush2.xpose.msra.mxu0 0.0
    %956 = vmatprep.subr.mxu0 0.0
    %957 = vmatpush2.xpose.msra.mxu0 0.0
    %958 = vmatprep.subr.mxu0 0.0
    %959 = vmatpush2.xpose.msra.mxu0 0.0
    %960 = vmatprep.subr.mxu0 0.0
    %961 = vmatpush2.xpose.msra.mxu0 0.0
    %962 = vmatprep.mubr.f32.mxu0 0.0
    %963 = vmatmul.mubr.f32.gmra.mxu0 %v894
    %v964 = vpop.f32.mrf.mxu0
    %v965 = vadd.f32 0.0, %v964
    %v966 = vpop.f32.mrf.mxu0
    %967 = vdwg.mxu0
    %968 = vrot.lane.b32.xlu0 %v221, 112
    %v969 = vpop.permute.xlu0 %968
    %970 = vrot.lane.b32.xlu0 %v221, 80
    %v971 = vpop.permute.xlu0 %970
    %v972 = vsel %vm226, %v969, 0
    %v974 = vsel %vm226, %v971, 0
    %976 = vmatprep.subr.mxu0 0.0
    %977 = vmatpush1.xpose.msra.mxu0 0.0
    %978 = vmatprep.subr.mxu0 0.0
    %979 = vmatpush1.xpose.msra.mxu0 0.0
    %980 = vmatprep.subr.mxu0 0.0
    %981 = vmatpush1.xpose.msra.mxu0 0.0
    %982 = vmatprep.subr.mxu0 0.0
    %983 = vmatpush1.xpose.msra.mxu0 0.0
    %984 = vmatprep.subr.mxu0 0.0
    %985 = vmatpush1.xpose.msra.mxu0 0.0
    %986 = vmatprep.subr.mxu0 0.0
    %987 = vmatpush1.xpose.msra.mxu0 0.0
    %988 = vmatprep.subr.mxu0 0.0
    %989 = vmatpush1.xpose.msra.mxu0 0.0
    %990 = vmatprep.subr.mxu0 0.0
    %991 = vmatpush1.xpose.msra.mxu0 0.0
    %992 = vmatprep.subr.mxu0 0.0
    %993 = vmatpush1.xpose.msra.mxu0 0.0
    %994 = vmatprep.subr.mxu0 0.0
    %995 = vmatpush1.xpose.msra.mxu0 0.0
    %996 = vmatprep.subr.mxu0 0.0
    %997 = vmatpush1.xpose.msra.mxu0 0.0
    %998 = vmatprep.subr.mxu0 0.0
    %999 = vmatpush1.xpose.msra.mxu0 0.0
    %1000 = vmatprep.subr.mxu0 0.0
    %1001 = vmatpush1.xpose.msra.mxu0 0.0
    %1002 = vmatprep.subr.mxu0 0.0
    %1003 = vmatpush1.xpose.msra.mxu0 0.0
    %1004 = vmatprep.subr.mxu0 0.0
    %1005 = vmatpush1.xpose.msra.mxu0 0.0
    %1006 = vmatprep.subr.mxu0 0.0
    %1007 = vmatpush1.xpose.msra.mxu0 %v974
    %1008 = vmatprep.subr.mxu0 0.0
    %1009 = vmatpush2.xpose.msra.mxu0 0.0
    %1010 = vmatprep.subr.mxu0 0.0
    %1011 = vmatpush2.xpose.msra.mxu0 0.0
    %1012 = vmatprep.subr.mxu0 0.0
    %1013 = vmatpush2.xpose.msra.mxu0 0.0
    %1014 = vmatprep.subr.mxu0 0.0
    %1015 = vmatpush2.xpose.msra.mxu0 0.0
    %1016 = vmatprep.subr.mxu0 0.0
    %1017 = vmatpush2.xpose.msra.mxu0 0.0
    %1018 = vmatprep.subr.mxu0 0.0
    %1019 = vmatpush2.xpose.msra.mxu0 0.0
    %1020 = vmatprep.subr.mxu0 0.0
    %1021 = vmatpush2.xpose.msra.mxu0 0.0
    %1022 = vmatprep.subr.mxu0 0.0
    %1023 = vmatpush2.xpose.msra.mxu0 0.0
    %1024 = vmatprep.subr.mxu0 0.0
    %1025 = vmatpush2.xpose.msra.mxu0 0.0
    %1026 = vmatprep.subr.mxu0 0.0
    %1027 = vmatpush2.xpose.msra.mxu0 0.0
    %1028 = vmatprep.subr.mxu0 0.0
    %1029 = vmatpush2.xpose.msra.mxu0 0.0
    %1030 = vmatprep.subr.mxu0 0.0
    %1031 = vmatpush2.xpose.msra.mxu0 0.0
    %1032 = vmatprep.subr.mxu0 0.0
    %1033 = vmatpush2.xpose.msra.mxu0 0.0
    %1034 = vmatprep.subr.mxu0 0.0
    %1035 = vmatpush2.xpose.msra.mxu0 0.0
    %1036 = vmatprep.subr.mxu0 0.0
    %1037 = vmatpush2.xpose.msra.mxu0 0.0
    %1038 = vmatprep.subr.mxu0 0.0
    %1039 = vmatpush2.xpose.msra.mxu0 0.0
    %1040 = vmatprep.mubr.f32.mxu0 0.0
    %1041 = vmatmul.mubr.f32.gmra.mxu0 %v972
    %v1042 = vpop.f32.mrf.mxu0
    %v1043 = vadd.f32 0.0, %v1042
    %v1044 = vpop.f32.mrf.mxu0
    %1045 = vdwg.mxu0
    %v1046 = vsel %vm226, %v965, -inf
    %1047 = vmax.xlane.f32.xlu0 %v1046
    %v1048 = vpop.xlane.xlu0 %1047
    %v1049 = vsel %vm226, %v1043, -inf
    %1050 = vmax.xlane.f32.xlu0 %v1049
    %v1051 = vpop.xlane.xlu0 %1050
    %v1052 = vsub.f32 %v965, %v1048
    %v1053 = vsub.f32 %v1043, %v1051
    %v1054 = vmul.f32 %v1052, 1.442695
    %v1055 = vpow.pop %v1054
    %v1056 = vmul.f32 %v1053, 1.442695
    %v1057 = vpow.pop %v1056
    %v1058 = vsel %vm226, %v1055, 0.0
    %1059 = vadd.xlane.f32.xlu0 %v1058
    %v1060 = vpop.xlane.xlu0 %1059
    %v1061 = vsel %vm226, %v1057, 0.0
    %1062 = vadd.xlane.f32.xlu0 %v1061
    %v1063 = vpop.xlane.xlu0 %1062
    %v1064 = vrcp.pop %v1060
    %v1065 = vrcp.pop %v1063
    %v1066 = vmul.f32 %v1060, %v1064
    %v1067 = vmul.f32 %v1063, %v1065
    %v1068 = vsub.f32 2.0, %v1066
    %v1069 = vsub.f32 2.0, %v1067
    %v1070 = vmul.f32 %v1064, %v1068
    %v1071 = vmul.f32 %v1065, %v1069
    %v1072 = vmul.f32 %v1055, %v1070
    %v1073 = vmul.f32 %v1057, %v1071
    %1074 = vrot.lane.b32.xlu0 %v213, 64
    %v1075 = vpop.permute.xlu0 %1074
    %v1078 = vsel %vm226, %v1072, 0
    %1080 = vmatprep.subr.mxu0 0.0
    %1081 = vmatpush1.msra.mxu0 0.0
    %1082 = vmatprep.subr.mxu0 0.0
    %1083 = vmatpush1.msra.mxu0 0.0
    %1084 = vmatprep.subr.mxu0 0.0
    %1085 = vmatpush1.msra.mxu0 0.0
    %1086 = vmatprep.subr.mxu0 0.0
    %1087 = vmatpush1.msra.mxu0 0.0
    %1088 = vmatprep.subr.mxu0 0.0
    %1089 = vmatpush1.msra.mxu0 0.0
    %1090 = vmatprep.subr.mxu0 0.0
    %1091 = vmatpush1.msra.mxu0 0.0
    %1092 = vmatprep.subr.mxu0 0.0
    %1093 = vmatpush1.msra.mxu0 0.0
    %1094 = vmatprep.subr.mxu0 0.0
    %1095 = vmatpush1.msra.mxu0 0.0
    %1096 = vmatprep.subr.mxu0 0.0
    %1097 = vmatpush1.msra.mxu0 0.0
    %1098 = vmatprep.subr.mxu0 0.0
    %1099 = vmatpush1.msra.mxu0 0.0
    %1100 = vmatprep.subr.mxu0 0.0
    %1101 = vmatpush1.msra.mxu0 0.0
    %1102 = vmatprep.subr.mxu0 0.0
    %1103 = vmatpush1.msra.mxu0 0.0
    %1104 = vmatprep.subr.mxu0 0.0
    %1105 = vmatpush1.msra.mxu0 0.0
    %1106 = vmatprep.subr.mxu0 0.0
    %1107 = vmatpush1.msra.mxu0 0.0
    %1108 = vmatprep.subr.mxu0 0.0
    %1109 = vmatpush1.msra.mxu0 0.0
    %1110 = vmatprep.subr.mxu0 0.0
    %1111 = vmatpush1.msra.mxu0 %v1075
    %1112 = vmatprep.subr.mxu0 0.0
    %1113 = vmatpush2.msra.mxu0 0.0
    %1114 = vmatprep.subr.mxu0 0.0
    %1115 = vmatpush2.msra.mxu0 0.0
    %1116 = vmatprep.subr.mxu0 0.0
    %1117 = vmatpush2.msra.mxu0 0.0
    %1118 = vmatprep.subr.mxu0 0.0
    %1119 = vmatpush2.msra.mxu0 0.0
    %1120 = vmatprep.subr.mxu0 0.0
    %1121 = vmatpush2.msra.mxu0 0.0
    %1122 = vmatprep.subr.mxu0 0.0
    %1123 = vmatpush2.msra.mxu0 0.0
    %1124 = vmatprep.subr.mxu0 0.0
    %1125 = vmatpush2.msra.mxu0 0.0
    %1126 = vmatprep.subr.mxu0 0.0
    %1127 = vmatpush2.msra.mxu0 0.0
    %1128 = vmatprep.subr.mxu0 0.0
    %1129 = vmatpush2.msra.mxu0 0.0
    %1130 = vmatprep.subr.mxu0 0.0
    %1131 = vmatpush2.msra.mxu0 0.0
    %1132 = vmatprep.subr.mxu0 0.0
    %1133 = vmatpush2.msra.mxu0 0.0
    %1134 = vmatprep.subr.mxu0 0.0
    %1135 = vmatpush2.msra.mxu0 0.0
    %1136 = vmatprep.subr.mxu0 0.0
    %1137 = vmatpush2.msra.mxu0 0.0
    %1138 = vmatprep.subr.mxu0 0.0
    %1139 = vmatpush2.msra.mxu0 0.0
    %1140 = vmatprep.subr.mxu0 0.0
    %1141 = vmatpush2.msra.mxu0 0.0
    %1142 = vmatprep.subr.mxu0 0.0
    %1143 = vmatpush2.msra.mxu0 0.0
    %1144 = vmatprep.mubr.f32.mxu0 0.0
    %1145 = vmatmul.mubr.f32.gmra.mxu0 %v1078
    %v1146 = vpop.f32.mrf.mxu0
    %v1147 = vadd.f32 0.0, %v1146
    %v1148 = vpop.f32.mrf.mxu0
    %1149 = vdwg.mxu0
    %1150 = vrot.lane.b32.xlu0 %v219, 64
    %v1151 = vpop.permute.xlu0 %1150
    %v1154 = vsel %vm226, %v1073, 0
    %1156 = vmatprep.subr.mxu0 0.0
    %1157 = vmatpush1.msra.mxu0 0.0
    %1158 = vmatprep.subr.mxu0 0.0
    %1159 = vmatpush1.msra.mxu0 0.0
    %1160 = vmatprep.subr.mxu0 0.0
    %1161 = vmatpush1.msra.mxu0 0.0
    %1162 = vmatprep.subr.mxu0 0.0
    %1163 = vmatpush1.msra.mxu0 0.0
    %1164 = vmatprep.subr.mxu0 0.0
    %1165 = vmatpush1.msra.mxu0 0.0
    %1166 = vmatprep.subr.mxu0 0.0
    %1167 = vmatpush1.msra.mxu0 0.0
    %1168 = vmatprep.subr.mxu0 0.0
    %1169 = vmatpush1.msra.mxu0 0.0
    %1170 = vmatprep.subr.mxu0 0.0
    %1171 = vmatpush1.msra.mxu0 0.0
    %1172 = vmatprep.subr.mxu0 0.0
    %1173 = vmatpush1.msra.mxu0 0.0
    %1174 = vmatprep.subr.mxu0 0.0
    %1175 = vmatpush1.msra.mxu0 0.0
    %1176 = vmatprep.subr.mxu0 0.0
    %1177 = vmatpush1.msra.mxu0 0.0
    %1178 = vmatprep.subr.mxu0 0.0
    %1179 = vmatpush1.msra.mxu0 0.0
    %1180 = vmatprep.subr.mxu0 0.0
    %1181 = vmatpush1.msra.mxu0 0.0
    %1182 = vmatprep.subr.mxu0 0.0
    %1183 = vmatpush1.msra.mxu0 0.0
    %1184 = vmatprep.subr.mxu0 0.0
    %1185 = vmatpush1.msra.mxu0 0.0
    %1186 = vmatprep.subr.mxu0 0.0
    %1187 = vmatpush1.msra.mxu0 %v1151
    %1188 = vmatprep.subr.mxu0 0.0
    %1189 = vmatpush2.msra.mxu0 0.0
    %1190 = vmatprep.subr.mxu0 0.0
    %1191 = vmatpush2.msra.mxu0 0.0
    %1192 = vmatprep.subr.mxu0 0.0
    %1193 = vmatpush2.msra.mxu0 0.0
    %1194 = vmatprep.subr.mxu0 0.0
    %1195 = vmatpush2.msra.mxu0 0.0
    %1196 = vmatprep.subr.mxu0 0.0
    %1197 = vmatpush2.msra.mxu0 0.0
    %1198 = vmatprep.subr.mxu0 0.0
    %1199 = vmatpush2.msra.mxu0 0.0
    %1200 = vmatprep.subr.mxu0 0.0
    %1201 = vmatpush2.msra.mxu0 0.0
    %1202 = vmatprep.subr.mxu0 0.0
    %1203 = vmatpush2.msra.mxu0 0.0
    %1204 = vmatprep.subr.mxu0 0.0
    %1205 = vmatpush2.msra.mxu0 0.0
    %1206 = vmatprep.subr.mxu0 0.0
    %1207 = vmatpush2.msra.mxu0 0.0
    %1208 = vmatprep.subr.mxu0 0.0
    %1209 = vmatpush2.msra.mxu0 0.0
    %1210 = vmatprep.subr.mxu0 0.0
    %1211 = vmatpush2.msra.mxu0 0.0
    %1212 = vmatprep.subr.mxu0 0.0
    %1213 = vmatpush2.msra.mxu0 0.0
    %1214 = vmatprep.subr.mxu0 0.0
    %1215 = vmatpush2.msra.mxu0 0.0
    %1216 = vmatprep.subr.mxu0 0.0
    %1217 = vmatpush2.msra.mxu0 0.0
    %1218 = vmatprep.subr.mxu0 0.0
    %1219 = vmatpush2.msra.mxu0 0.0
    %1220 = vmatprep.mubr.f32.mxu0 0.0
    %1221 = vmatmul.mubr.f32.gmra.mxu0 %v1154
    %v1222 = vpop.f32.mrf.mxu0
    %v1223 = vadd.f32 0.0, %v1222
    %v1224 = vpop.f32.mrf.mxu0
    %1225 = vdwg.mxu0
    %v1226 = vadd.f32 %v814, %v1147
    %v1227 = vadd.f32 %v887, %v1223
    %1228 = vrot.lane.b32.xlu0 %v215, 104
    %v1229 = vpop.permute.xlu0 %1228
    %1230 = vrot.lane.b32.xlu0 %v215, 72
    %v1231 = vpop.permute.xlu0 %1230
    %v1232 = vsel %vm226, %v1229, 0
    %v1234 = vsel %vm226, %v1231, 0
    %1236 = vmatprep.subr.mxu0 0.0
    %1237 = vmatpush1.xpose.msra.mxu0 0.0
    %1238 = vmatprep.subr.mxu0 0.0
    %1239 = vmatpush1.xpose.msra.mxu0 0.0
    %1240 = vmatprep.subr.mxu0 0.0
    %1241 = vmatpush1.xpose.msra.mxu0 0.0
    %1242 = vmatprep.subr.mxu0 0.0
    %1243 = vmatpush1.xpose.msra.mxu0 0.0
    %1244 = vmatprep.subr.mxu0 0.0
    %1245 = vmatpush1.xpose.msra.mxu0 0.0
    %1246 = vmatprep.subr.mxu0 0.0
    %1247 = vmatpush1.xpose.msra.mxu0 0.0
    %1248 = vmatprep.subr.mxu0 0.0
    %1249 = vmatpush1.xpose.msra.mxu0 0.0
    %1250 = vmatprep.subr.mxu0 0.0
    %1251 = vmatpush1.xpose.msra.mxu0 0.0
    %1252 = vmatprep.subr.mxu0 0.0
    %1253 = vmatpush1.xpose.msra.mxu0 0.0
    %1254 = vmatprep.subr.mxu0 0.0
    %1255 = vmatpush1.xpose.msra.mxu0 0.0
    %1256 = vmatprep.subr.mxu0 0.0
    %1257 = vmatpush1.xpose.msra.mxu0 0.0
    %1258 = vmatprep.subr.mxu0 0.0
    %1259 = vmatpush1.xpose.msra.mxu0 0.0
    %1260 = vmatprep.subr.mxu0 0.0
    %1261 = vmatpush1.xpose.msra.mxu0 0.0
    %1262 = vmatprep.subr.mxu0 0.0
    %1263 = vmatpush1.xpose.msra.mxu0 0.0
    %1264 = vmatprep.subr.mxu0 0.0
    %1265 = vmatpush1.xpose.msra.mxu0 0.0
    %1266 = vmatprep.subr.mxu0 0.0
    %1267 = vmatpush1.xpose.msra.mxu0 %v1234
    %1268 = vmatprep.subr.mxu0 0.0
    %1269 = vmatpush2.xpose.msra.mxu0 0.0
    %1270 = vmatprep.subr.mxu0 0.0
    %1271 = vmatpush2.xpose.msra.mxu0 0.0
    %1272 = vmatprep.subr.mxu0 0.0
    %1273 = vmatpush2.xpose.msra.mxu0 0.0
    %1274 = vmatprep.subr.mxu0 0.0
    %1275 = vmatpush2.xpose.msra.mxu0 0.0
    %1276 = vmatprep.subr.mxu0 0.0
    %1277 = vmatpush2.xpose.msra.mxu0 0.0
    %1278 = vmatprep.subr.mxu0 0.0
    %1279 = vmatpush2.xpose.msra.mxu0 0.0
    %1280 = vmatprep.subr.mxu0 0.0
    %1281 = vmatpush2.xpose.msra.mxu0 0.0
    %1282 = vmatprep.subr.mxu0 0.0
    %1283 = vmatpush2.xpose.msra.mxu0 0.0
    %1284 = vmatprep.subr.mxu0 0.0
    %1285 = vmatpush2.xpose.msra.mxu0 0.0
    %1286 = vmatprep.subr.mxu0 0.0
    %1287 = vmatpush2.xpose.msra.mxu0 0.0
    %1288 = vmatprep.subr.mxu0 0.0
    %1289 = vmatpush2.xpose.msra.mxu0 0.0
    %1290 = vmatprep.subr.mxu0 0.0
    %1291 = vmatpush2.xpose.msra.mxu0 0.0
    %1292 = vmatprep.subr.mxu0 0.0
    %1293 = vmatpush2.xpose.msra.mxu0 0.0
    %1294 = vmatprep.subr.mxu0 0.0
    %1295 = vmatpush2.xpose.msra.mxu0 0.0
    %1296 = vmatprep.subr.mxu0 0.0
    %1297 = vmatpush2.xpose.msra.mxu0 0.0
    %1298 = vmatprep.subr.mxu0 0.0
    %1299 = vmatpush2.xpose.msra.mxu0 0.0
    %1300 = vmatprep.mubr.f32.mxu0 0.0
    %1301 = vmatmul.mubr.f32.gmra.mxu0 %v1232
    %v1302 = vpop.f32.mrf.mxu0
    %v1303 = vadd.f32 0.0, %v1302
    %v1304 = vpop.f32.mrf.mxu0
    %1305 = vdwg.mxu0
    %1306 = vrot.lane.b32.xlu0 %v221, 104
    %v1307 = vpop.permute.xlu0 %1306
    %1308 = vrot.lane.b32.xlu0 %v221, 72
    %v1309 = vpop.permute.xlu0 %1308
    %v1310 = vsel %vm226, %v1307, 0
    %v1312 = vsel %vm226, %v1309, 0
    %1314 = vmatprep.subr.mxu0 0.0
    %1315 = vmatpush1.xpose.msra.mxu0 0.0
    %1316 = vmatprep.subr.mxu0 0.0
    %1317 = vmatpush1.xpose.msra.mxu0 0.0
    %1318 = vmatprep.subr.mxu0 0.0
    %1319 = vmatpush1.xpose.msra.mxu0 0.0
    %1320 = vmatprep.subr.mxu0 0.0
    %1321 = vmatpush1.xpose.msra.mxu0 0.0
    %1322 = vmatprep.subr.mxu0 0.0
    %1323 = vmatpush1.xpose.msra.mxu0 0.0
    %1324 = vmatprep.subr.mxu0 0.0
    %1325 = vmatpush1.xpose.msra.mxu0 0.0
    %1326 = vmatprep.subr.mxu0 0.0
    %1327 = vmatpush1.xpose.msra.mxu0 0.0
    %1328 = vmatprep.subr.mxu0 0.0
    %1329 = vmatpush1.xpose.msra.mxu0 0.0
    %1330 = vmatprep.subr.mxu0 0.0
    %1331 = vmatpush1.xpose.msra.mxu0 0.0
    %1332 = vmatprep.subr.mxu0 0.0
    %1333 = vmatpush1.xpose.msra.mxu0 0.0
    %1334 = vmatprep.subr.mxu0 0.0
    %1335 = vmatpush1.xpose.msra.mxu0 0.0
    %1336 = vmatprep.subr.mxu0 0.0
    %1337 = vmatpush1.xpose.msra.mxu0 0.0
    %1338 = vmatprep.subr.mxu0 0.0
    %1339 = vmatpush1.xpose.msra.mxu0 0.0
    %1340 = vmatprep.subr.mxu0 0.0
    %1341 = vmatpush1.xpose.msra.mxu0 0.0
    %1342 = vmatprep.subr.mxu0 0.0
    %1343 = vmatpush1.xpose.msra.mxu0 0.0
    %1344 = vmatprep.subr.mxu0 0.0
    %1345 = vmatpush1.xpose.msra.mxu0 %v1312
    %1346 = vmatprep.subr.mxu0 0.0
    %1347 = vmatpush2.xpose.msra.mxu0 0.0
    %1348 = vmatprep.subr.mxu0 0.0
    %1349 = vmatpush2.xpose.msra.mxu0 0.0
    %1350 = vmatprep.subr.mxu0 0.0
    %1351 = vmatpush2.xpose.msra.mxu0 0.0
    %1352 = vmatprep.subr.mxu0 0.0
    %1353 = vmatpush2.xpose.msra.mxu0 0.0
    %1354 = vmatprep.subr.mxu0 0.0
    %1355 = vmatpush2.xpose.msra.mxu0 0.0
    %1356 = vmatprep.subr.mxu0 0.0
    %1357 = vmatpush2.xpose.msra.mxu0 0.0
    %1358 = vmatprep.subr.mxu0 0.0
    %1359 = vmatpush2.xpose.msra.mxu0 0.0
    %1360 = vmatprep.subr.mxu0 0.0
    %1361 = vmatpush2.xpose.msra.mxu0 0.0
    %1362 = vmatprep.subr.mxu0 0.0
    %1363 = vmatpush2.xpose.msra.mxu0 0.0
    %1364 = vmatprep.subr.mxu0 0.0
    %1365 = vmatpush2.xpose.msra.mxu0 0.0
    %1366 = vmatprep.subr.mxu0 0.0
    %1367 = vmatpush2.xpose.msra.mxu0 0.0
    %1368 = vmatprep.subr.mxu0 0.0
    %1369 = vmatpush2.xpose.msra.mxu0 0.0
    %1370 = vmatprep.subr.mxu0 0.0
    %1371 = vmatpush2.xpose.msra.mxu0 0.0
    %1372 = vmatprep.subr.mxu0 0.0
    %1373 = vmatpush2.xpose.msra.mxu0 0.0
    %1374 = vmatprep.subr.mxu0 0.0
    %1375 = vmatpush2.xpose.msra.mxu0 0.0
    %1376 = vmatprep.subr.mxu0 0.0
    %1377 = vmatpush2.xpose.msra.mxu0 0.0
    %1378 = vmatprep.mubr.f32.mxu0 0.0
    %1379 = vmatmul.mubr.f32.gmra.mxu0 %v1310
    %v1380 = vpop.f32.mrf.mxu0
    %v1381 = vadd.f32 0.0, %v1380
    %v1382 = vpop.f32.mrf.mxu0
    %1383 = vdwg.mxu0
    %v1384 = vsel %vm226, %v1303, -inf
    %1385 = vmax.xlane.f32.xlu0 %v1384
    %v1386 = vpop.xlane.xlu0 %1385
    %v1387 = vsel %vm226, %v1381, -inf
    %1388 = vmax.xlane.f32.xlu0 %v1387
    %v1389 = vpop.xlane.xlu0 %1388
    %v1390 = vsub.f32 %v1303, %v1386
    %v1391 = vsub.f32 %v1381, %v1389
    %v1392 = vmul.f32 %v1390, 1.442695
    %v1393 = vpow.pop %v1392
    %v1394 = vmul.f32 %v1391, 1.442695
    %v1395 = vpow.pop %v1394
    %v1396 = vsel %vm226, %v1393, 0.0
    %1397 = vadd.xlane.f32.xlu0 %v1396
    %v1398 = vpop.xlane.xlu0 %1397
    %v1399 = vsel %vm226, %v1395, 0.0
    %1400 = vadd.xlane.f32.xlu0 %v1399
    %v1401 = vpop.xlane.xlu0 %1400
    %v1402 = vrcp.pop %v1398
    %v1403 = vrcp.pop %v1401
    %v1404 = vmul.f32 %v1398, %v1402
    %v1405 = vmul.f32 %v1401, %v1403
    %v1406 = vsub.f32 2.0, %v1404
    %v1407 = vsub.f32 2.0, %v1405
    %v1408 = vmul.f32 %v1402, %v1406
    %v1409 = vmul.f32 %v1403, %v1407
    %v1410 = vmul.f32 %v1393, %v1408
    %v1411 = vmul.f32 %v1395, %v1409
    %1412 = vrot.lane.b32.xlu0 %v213, 32
    %v1413 = vpop.permute.xlu0 %1412
    %v1416 = vsel %vm226, %v1410, 0
    %1418 = vmatprep.subr.mxu0 0.0
    %1419 = vmatpush1.msra.mxu0 0.0
    %1420 = vmatprep.subr.mxu0 0.0
    %1421 = vmatpush1.msra.mxu0 0.0
    %1422 = vmatprep.subr.mxu0 0.0
    %1423 = vmatpush1.msra.mxu0 0.0
    %1424 = vmatprep.subr.mxu0 0.0
    %1425 = vmatpush1.msra.mxu0 0.0
    %1426 = vmatprep.subr.mxu0 0.0
    %1427 = vmatpush1.msra.mxu0 0.0
    %1428 = vmatprep.subr.mxu0 0.0
    %1429 = vmatpush1.msra.mxu0 0.0
    %1430 = vmatprep.subr.mxu0 0.0
    %1431 = vmatpush1.msra.mxu0 0.0
    %1432 = vmatprep.subr.mxu0 0.0
    %1433 = vmatpush1.msra.mxu0 0.0
    %1434 = vmatprep.subr.mxu0 0.0
    %1435 = vmatpush1.msra.mxu0 0.0
    %1436 = vmatprep.subr.mxu0 0.0
    %1437 = vmatpush1.msra.mxu0 0.0
    %1438 = vmatprep.subr.mxu0 0.0
    %1439 = vmatpush1.msra.mxu0 0.0
    %1440 = vmatprep.subr.mxu0 0.0
    %1441 = vmatpush1.msra.mxu0 0.0
    %1442 = vmatprep.subr.mxu0 0.0
    %1443 = vmatpush1.msra.mxu0 0.0
    %1444 = vmatprep.subr.mxu0 0.0
    %1445 = vmatpush1.msra.mxu0 0.0
    %1446 = vmatprep.subr.mxu0 0.0
    %1447 = vmatpush1.msra.mxu0 0.0
    %1448 = vmatprep.subr.mxu0 0.0
    %1449 = vmatpush1.msra.mxu0 %v1413
    %1450 = vmatprep.subr.mxu0 0.0
    %1451 = vmatpush2.msra.mxu0 0.0
    %1452 = vmatprep.subr.mxu0 0.0
    %1453 = vmatpush2.msra.mxu0 0.0
    %1454 = vmatprep.subr.mxu0 0.0
    %1455 = vmatpush2.msra.mxu0 0.0
    %1456 = vmatprep.subr.mxu0 0.0
    %1457 = vmatpush2.msra.mxu0 0.0
    %1458 = vmatprep.subr.mxu0 0.0
    %1459 = vmatpush2.msra.mxu0 0.0
    %1460 = vmatprep.subr.mxu0 0.0
    %1461 = vmatpush2.msra.mxu0 0.0
    %1462 = vmatprep.subr.mxu0 0.0
    %1463 = vmatpush2.msra.mxu0 0.0
    %1464 = vmatprep.subr.mxu0 0.0
    %1465 = vmatpush2.msra.mxu0 0.0
    %1466 = vmatprep.subr.mxu0 0.0
    %1467 = vmatpush2.msra.mxu0 0.0
    %1468 = vmatprep.subr.mxu0 0.0
    %1469 = vmatpush2.msra.mxu0 0.0
    %1470 = vmatprep.subr.mxu0 0.0
    %1471 = vmatpush2.msra.mxu0 0.0
    %1472 = vmatprep.subr.mxu0 0.0
    %1473 = vmatpush2.msra.mxu0 0.0
    %1474 = vmatprep.subr.mxu0 0.0
    %1475 = vmatpush2.msra.mxu0 0.0
    %1476 = vmatprep.subr.mxu0 0.0
    %1477 = vmatpush2.msra.mxu0 0.0
    %1478 = vmatprep.subr.mxu0 0.0
    %1479 = vmatpush2.msra.mxu0 0.0
    %1480 = vmatprep.subr.mxu0 0.0
    %1481 = vmatpush2.msra.mxu0 0.0
    %1482 = vmatprep.mubr.f32.mxu0 0.0
    %1483 = vmatmul.mubr.f32.gmra.mxu0 %v1416
    %v1484 = vpop.f32.mrf.mxu0
    %v1485 = vadd.f32 0.0, %v1484
    %v1486 = vpop.f32.mrf.mxu0
    %1487 = vdwg.mxu0
    %1488 = vrot.lane.b32.xlu0 %v219, 32
    %v1489 = vpop.permute.xlu0 %1488
    %v1492 = vsel %vm226, %v1411, 0
    %1494 = vmatprep.subr.mxu0 0.0
    %1495 = vmatpush1.msra.mxu0 0.0
    %1496 = vmatprep.subr.mxu0 0.0
    %1497 = vmatpush1.msra.mxu0 0.0
    %1498 = vmatprep.subr.mxu0 0.0
    %1499 = vmatpush1.msra.mxu0 0.0
    %1500 = vmatprep.subr.mxu0 0.0
    %1501 = vmatpush1.msra.mxu0 0.0
    %1502 = vmatprep.subr.mxu0 0.0
    %1503 = vmatpush1.msra.mxu0 0.0
    %1504 = vmatprep.subr.mxu0 0.0
    %1505 = vmatpush1.msra.mxu0 0.0
    %1506 = vmatprep.subr.mxu0 0.0
    %1507 = vmatpush1.msra.mxu0 0.0
    %1508 = vmatprep.subr.mxu0 0.0
    %1509 = vmatpush1.msra.mxu0 0.0
    %1510 = vmatprep.subr.mxu0 0.0
    %1511 = vmatpush1.msra.mxu0 0.0
    %1512 = vmatprep.subr.mxu0 0.0
    %1513 = vmatpush1.msra.mxu0 0.0
    %1514 = vmatprep.subr.mxu0 0.0
    %1515 = vmatpush1.msra.mxu0 0.0
    %1516 = vmatprep.subr.mxu0 0.0
    %1517 = vmatpush1.msra.mxu0 0.0
    %1518 = vmatprep.subr.mxu0 0.0
    %1519 = vmatpush1.msra.mxu0 0.0
    %1520 = vmatprep.subr.mxu0 0.0
    %1521 = vmatpush1.msra.mxu0 0.0
    %1522 = vmatprep.subr.mxu0 0.0
    %1523 = vmatpush1.msra.mxu0 0.0
    %1524 = vmatprep.subr.mxu0 0.0
    %1525 = vmatpush1.msra.mxu0 %v1489
    %1526 = vmatprep.subr.mxu0 0.0
    %1527 = vmatpush2.msra.mxu0 0.0
    %1528 = vmatprep.subr.mxu0 0.0
    %1529 = vmatpush2.msra.mxu0 0.0
    %1530 = vmatprep.subr.mxu0 0.0
    %1531 = vmatpush2.msra.mxu0 0.0
    %1532 = vmatprep.subr.mxu0 0.0
    %1533 = vmatpush2.msra.mxu0 0.0
    %1534 = vmatprep.subr.mxu0 0.0
    %1535 = vmatpush2.msra.mxu0 0.0
    %1536 = vmatprep.subr.mxu0 0.0
    %1537 = vmatpush2.msra.mxu0 0.0
    %1538 = vmatprep.subr.mxu0 0.0
    %1539 = vmatpush2.msra.mxu0 0.0
    %1540 = vmatprep.subr.mxu0 0.0
    %1541 = vmatpush2.msra.mxu0 0.0
    %1542 = vmatprep.subr.mxu0 0.0
    %1543 = vmatpush2.msra.mxu0 0.0
    %1544 = vmatprep.subr.mxu0 0.0
    %1545 = vmatpush2.msra.mxu0 0.0
    %1546 = vmatprep.subr.mxu0 0.0
    %1547 = vmatpush2.msra.mxu0 0.0
    %1548 = vmatprep.subr.mxu0 0.0
    %1549 = vmatpush2.msra.mxu0 0.0
    %1550 = vmatprep.subr.mxu0 0.0
    %1551 = vmatpush2.msra.mxu0 0.0
    %1552 = vmatprep.subr.mxu0 0.0
    %1553 = vmatpush2.msra.mxu0 0.0
    %1554 = vmatprep.subr.mxu0 0.0
    %1555 = vmatpush2.msra.mxu0 0.0
    %1556 = vmatprep.subr.mxu0 0.0
    %1557 = vmatpush2.msra.mxu0 0.0
    %1558 = vmatprep.mubr.f32.mxu0 0.0
    %1559 = vmatmul.mubr.f32.gmra.mxu0 %v1492
    %v1560 = vpop.f32.mrf.mxu0
    %v1561 = vadd.f32 0.0, %v1560
    %v1562 = vpop.f32.mrf.mxu0
    %1563 = vdwg.mxu0
    %v1564 = vadd.f32 %v1226, %v1485
    %v1565 = vadd.f32 %v1227, %v1561
    %v1566 = vadd.f32 %v60, %v1564
    %v1567 = vadd.f32 %v61, %v1565
    %v1568 = vld [vmem:[%s3] sm:$0x1]
    %v1570 = vlaneseq
    %v1571 = vshrl.u32 %v1570, 7
    %v1572 = vsub.s32 0, %v1571
    %v1573 = vrot.slane %v1568, %v1572
    %v1575 = vadd.f32 %v1566, %v1573
    %v1576 = vadd.f32 %v1567, %v1573
    %v1577 = vsel %vm66, %v1575, 0.0
    %1578 = vadd.xlane.f32.xlu0 %v1577
    %v1579 = vpop.xlane.xlu0 %1578
    %v1580 = vsel %vm66, %v1576, 0.0
    %1581 = vadd.xlane.f32.xlu0 %v1580
    %v1582 = vpop.xlane.xlu0 %1581
    %v1583 = vmul.f32 %v1579, %v73
    %v1584 = vmul.f32 %v1582, %v73
    %v1585 = vsub.f32 %v1575, %v1583
    %v1586 = vsub.f32 %v1576, %v1584
    %v1587 = vmul.f32 %v1585, %v1585
    %v1588 = vmul.f32 %v1586, %v1586
    %v1589 = vsel %vm66, %v1587, 0.0
    %1590 = vadd.xlane.f32.xlu0 %v1589
    %v1591 = vpop.xlane.xlu0 %1590
    %v1592 = vsel %vm66, %v1588, 0.0
    %1593 = vadd.xlane.f32.xlu0 %v1592
    %v1594 = vpop.xlane.xlu0 %1593
    %v1595 = vmul.f32 %v1591, 0.032258064
    %v1596 = vmul.f32 %v1594, 0.032258064
    %v1597 = vrsqrt.pop %v1595
    %v1598 = vmul.f32 %v1595, %v1597
    %vm1599 = vcmp.eq.f32.partialorder %v1595, inf
    %v1600 = vsel %vm1599, %v1595, %v1598
    %vm1601 = vcmp.eq.f32.partialorder %v1595, 0.0
    %v1602 = vand.u32 %v1595, 2147483648
    %v1603 = vsel %vm1601, %v1602, %v1600
    %v1604 = vrsqrt.pop %v1596
    %v1605 = vmul.f32 %v1596, %v1604
    %vm1606 = vcmp.eq.f32.partialorder %v1596, inf
    %v1607 = vsel %vm1606, %v1596, %v1605
    %vm1608 = vcmp.eq.f32.partialorder %v1596, 0.0
    %v1609 = vand.u32 %v1596, 2147483648
    %v1610 = vsel %vm1608, %v1609, %v1607
    %v1611 = vadd.f32 %v1603, 1e-06
    %v1612 = vadd.f32 %v1610, 1e-06
    %v1613 = vrcp.pop %v1611
    %v1614 = vrcp.pop %v1612
    %v1615 = vmul.f32 %v1611, %v1613
    %v1616 = vmul.f32 %v1612, %v1614
    %v1617 = vsub.f32 2.0, %v1615
    %v1618 = vsub.f32 2.0, %v1616
    %v1619 = vmul.f32 %v1613, %v1617
    %v1620 = vmul.f32 %v1614, %v1618
    %v1621 = vstv %s64
    %v1622 = vmul.f32 %v1621, %v1619
    %v1623 = vmul.f32 %v1621, %v1620
    %v1624 = vmul.f32 %v1585, %v1622
    %v1625 = vmul.f32 %v1586, %v1623
    %v1626 = vstv %s65
    %v1627 = vadd.f32 %v1624, %v1626
    %v1628 = vadd.f32 %v1625, %v1626
    %v1629 = vld [vmem:[%s4] sm:$0xff]
    %v1630 = vld [vmem:[%s4 + $0x8] sm:$0xff]
    %v1631 = vld [vmem:[%s4 + $0x10] sm:$0xff]
    %v1632 = vld [vmem:[%s4 + $0x18] sm:$0xff]
    %v1633 = vld [vmem:[%s5] sm:$0x1]
    %v1635 = vlaneseq
    %v1636 = vshrl.u32 %v1635, 7
    %v1637 = vsub.s32 0, %v1636
    %v1638 = vrot.slane %v1633, %v1637
    %v1641 = vsel %vm66, %v1627, 0
    %v1644 = vsel %vm66, %v1628, 0
    %1646 = vmatprep.subr.mxu0 0.0
    %1647 = vmatpush1.msra.mxu0 0.0
    %1648 = vmatprep.subr.mxu0 0.0
    %1649 = vmatpush1.msra.mxu0 0.0
    %1650 = vmatprep.subr.mxu0 0.0
    %1651 = vmatpush1.msra.mxu0 0.0
    %1652 = vmatprep.subr.mxu0 0.0
    %1653 = vmatpush1.msra.mxu0 0.0
    %1654 = vmatprep.subr.mxu0 0.0
    %1655 = vmatpush1.msra.mxu0 0.0
    %1656 = vmatprep.subr.mxu0 0.0
    %1657 = vmatpush1.msra.mxu0 0.0
    %1658 = vmatprep.subr.mxu0 0.0
    %1659 = vmatpush1.msra.mxu0 0.0
    %1660 = vmatprep.subr.mxu0 0.0
    %1661 = vmatpush1.msra.mxu0 0.0
    %1662 = vmatprep.subr.mxu0 0.0
    %1663 = vmatpush1.msra.mxu0 0.0
    %1664 = vmatprep.subr.mxu0 0.0
    %1665 = vmatpush1.msra.mxu0 0.0
    %1666 = vmatprep.subr.mxu0 0.0
    %1667 = vmatpush1.msra.mxu0 0.0
    %1668 = vmatprep.subr.mxu0 0.0
    %1669 = vmatpush1.msra.mxu0 0.0
    %1670 = vmatprep.subr.mxu0 0.0
    %1671 = vmatpush1.msra.mxu0 %v1632
    %1672 = vmatprep.subr.mxu0 0.0
    %1673 = vmatpush1.msra.mxu0 %v1631
    %1674 = vmatprep.subr.mxu0 0.0
    %1675 = vmatpush1.msra.mxu0 %v1630
    %1676 = vmatprep.subr.mxu0 0.0
    %1677 = vmatpush1.msra.mxu0 %v1629
    %1678 = vmatprep.subr.mxu0 0.0
    %1679 = vmatpush2.msra.mxu0 0.0
    %1680 = vmatprep.subr.mxu0 0.0
    %1681 = vmatpush2.msra.mxu0 0.0
    %1682 = vmatprep.subr.mxu0 0.0
    %1683 = vmatpush2.msra.mxu0 0.0
    %1684 = vmatprep.subr.mxu0 0.0
    %1685 = vmatpush2.msra.mxu0 0.0
    %1686 = vmatprep.subr.mxu0 0.0
    %1687 = vmatpush2.msra.mxu0 0.0
    %1688 = vmatprep.subr.mxu0 0.0
    %1689 = vmatpush2.msra.mxu0 0.0
    %1690 = vmatprep.subr.mxu0 0.0
    %1691 = vmatpush2.msra.mxu0 0.0
    %1692 = vmatprep.subr.mxu0 0.0
    %1693 = vmatpush2.msra.mxu0 0.0
    %1694 = vmatprep.subr.mxu0 0.0
    %1695 = vmatpush2.msra.mxu0 0.0
    %1696 = vmatprep.subr.mxu0 0.0
    %1697 = vmatpush2.msra.mxu0 0.0
    %1698 = vmatprep.subr.mxu0 0.0
    %1699 = vmatpush2.msra.mxu0 0.0
    %1700 = vmatprep.subr.mxu0 0.0
    %1701 = vmatpush2.msra.mxu0 0.0
    %1702 = vmatprep.subr.mxu0 0.0
    %1703 = vmatpush2.msra.mxu0 0.0
    %1704 = vmatprep.subr.mxu0 0.0
    %1705 = vmatpush2.msra.mxu0 0.0
    %1706 = vmatprep.subr.mxu0 0.0
    %1707 = vmatpush2.msra.mxu0 0.0
    %1708 = vmatprep.subr.mxu0 0.0
    %1709 = vmatpush2.msra.mxu0 0.0
    %1710 = vmatprep.mubr.f32.mxu0 0.0
    %1711 = vmatmul.mubr.f32.gmra.mxu0 %v1641
    %v1712 = vpop.f32.mrf.mxu0
    %v1713 = vadd.f32 %v1638, %v1712
    %v1714 = vpop.f32.mrf.mxu0
    %1715 = vmatprep.mubr.f32.mxu0 0.0
    %1716 = vmatmul.mubr.f32.gmra.mxu0 %v1644
    %v1717 = vpop.f32.mrf.mxu0
    %v1718 = vadd.f32 %v1638, %v1717
    %v1719 = vpop.f32.mrf.mxu0
    %1720 = vdwg.mxu0
    %v1721 = vmax.f32 %v1713, 0.0
    %v1722 = vmax.f32 %v1718, 0.0
    %v1723 = vld [vmem:[%s6] sm:$0xff]
    %v1724 = vld [vmem:[%s6 + $0x8] sm:$0xff]
    %v1725 = vld [vmem:[%s6 + $0x10] sm:$0xff]
    %v1726 = vld [vmem:[%s6 + $0x18] sm:$0xff]
    %v1727 = vld [vmem:[%s6 + $0x20] sm:$0xff]
    %v1728 = vld [vmem:[%s6 + $0x28] sm:$0xff]
    %v1729 = vld [vmem:[%s6 + $0x30] sm:$0xff]
    %v1730 = vld [vmem:[%s6 + $0x38] sm:$0xff]
    %v1731 = vld [vmem:[%s7] sm:$0x1]
    %v1733 = vlaneseq
    %v1734 = vshrl.u32 %v1733, 7
    %v1735 = vsub.s32 0, %v1734
    %v1736 = vrot.slane %v1731, %v1735
    %vm1738 = vcmask 523264
    %v1740 = vsel %vm1738, %v1721, 0
    %v1743 = vsel %vm1738, %v1722, 0
    %1745 = vmatprep.subr.mxu0 0.0
    %1746 = vmatpush1.msra.mxu0 0.0
    %1747 = vmatprep.subr.mxu0 0.0
    %1748 = vmatpush1.msra.mxu0 0.0
    %1749 = vmatprep.subr.mxu0 0.0
    %1750 = vmatpush1.msra.mxu0 0.0
    %1751 = vmatprep.subr.mxu0 0.0
    %1752 = vmatpush1.msra.mxu0 0.0
    %1753 = vmatprep.subr.mxu0 0.0
    %1754 = vmatpush1.msra.mxu0 0.0
    %1755 = vmatprep.subr.mxu0 0.0
    %1756 = vmatpush1.msra.mxu0 0.0
    %1757 = vmatprep.subr.mxu0 0.0
    %1758 = vmatpush1.msra.mxu0 0.0
    %1759 = vmatprep.subr.mxu0 0.0
    %1760 = vmatpush1.msra.mxu0 0.0
    %1761 = vmatprep.subr.mxu0 0.0
    %1762 = vmatpush1.msra.mxu0 %v1730
    %1763 = vmatprep.subr.mxu0 0.0
    %1764 = vmatpush1.msra.mxu0 %v1729
    %1765 = vmatprep.subr.mxu0 0.0
    %1766 = vmatpush1.msra.mxu0 %v1728
    %1767 = vmatprep.subr.mxu0 0.0
    %1768 = vmatpush1.msra.mxu0 %v1727
    %1769 = vmatprep.subr.mxu0 0.0
    %1770 = vmatpush1.msra.mxu0 %v1726
    %1771 = vmatprep.subr.mxu0 0.0
    %1772 = vmatpush1.msra.mxu0 %v1725
    %1773 = vmatprep.subr.mxu0 0.0
    %1774 = vmatpush1.msra.mxu0 %v1724
    %1775 = vmatprep.subr.mxu0 0.0
    %1776 = vmatpush1.msra.mxu0 %v1723
    %1777 = vmatprep.subr.mxu0 0.0
    %1778 = vmatpush2.msra.mxu0 0.0
    %1779 = vmatprep.subr.mxu0 0.0
    %1780 = vmatpush2.msra.mxu0 0.0
    %1781 = vmatprep.subr.mxu0 0.0
    %1782 = vmatpush2.msra.mxu0 0.0
    %1783 = vmatprep.subr.mxu0 0.0
    %1784 = vmatpush2.msra.mxu0 0.0
    %1785 = vmatprep.subr.mxu0 0.0
    %1786 = vmatpush2.msra.mxu0 0.0
    %1787 = vmatprep.subr.mxu0 0.0
    %1788 = vmatpush2.msra.mxu0 0.0
    %1789 = vmatprep.subr.mxu0 0.0
    %1790 = vmatpush2.msra.mxu0 0.0
    %1791 = vmatprep.subr.mxu0 0.0
    %1792 = vmatpush2.msra.mxu0 0.0
    %1793 = vmatprep.subr.mxu0 0.0
    %1794 = vmatpush2.msra.mxu0 0.0
    %1795 = vmatprep.subr.mxu0 0.0
    %1796 = vmatpush2.msra.mxu0 0.0
    %1797 = vmatprep.subr.mxu0 0.0
    %1798 = vmatpush2.msra.mxu0 0.0
    %1799 = vmatprep.subr.mxu0 0.0
    %1800 = vmatpush2.msra.mxu0 0.0
    %1801 = vmatprep.subr.mxu0 0.0
    %1802 = vmatpush2.msra.mxu0 0.0
    %1803 = vmatprep.subr.mxu0 0.0
    %1804 = vmatpush2.msra.mxu0 0.0
    %1805 = vmatprep.subr.mxu0 0.0
    %1806 = vmatpush2.msra.mxu0 0.0
    %1807 = vmatprep.subr.mxu0 0.0
    %1808 = vmatpush2.msra.mxu0 0.0
    %1809 = vmatprep.mubr.f32.mxu0 0.0
    %1810 = vmatmul.mubr.f32.gmra.mxu0 %v1740
    %v1811 = vpop.f32.mrf.mxu0
    %v1812 = vadd.f32 %v1736, %v1811
    %v1813 = vpop.f32.mrf.mxu0
    %1814 = vmatprep.mubr.f32.mxu0 0.0
    %1815 = vmatmul.mubr.f32.gmra.mxu0 %v1743
    %v1816 = vpop.f32.mrf.mxu0
    %v1817 = vadd.f32 %v1736, %v1816
    %v1818 = vpop.f32.mrf.mxu0
    %1819 = vdwg.mxu0
    %v1820 = vadd.f32 %v1575, %v1812
    %v1821 = vadd.f32 %v1576, %v1817
    %1822 = vst.msk [vmem:[#allocation7] sm:$0xff] %vm66, %v1820
    %1823 = vst.msk [vmem:[#allocation7 + $0x8] sm:$0xff] %vm66, %v1821
    // Predicated region
    $region46: #{_encoder_block.1} parent=1 // pred_check
      _
    $region47: #{_encoder_block.1} parent=1 // pred_check_branch
      %1825 = sbr.rel (0) target = $region49
    $region48: #{_encoder_block.1} parent=1 // pred_region
      %s1827 = ssub.s32 256, 256
      %1828 = vsyncadd [#allocation4], %s1827
      %s1829 = sshll.u32 [#allocation7], 4
      %s1830 = int_to_ptr.vmem [resolvable:$true] %s1829
      %1835 = dma.vmem_to_hbm [thread:$0]  %s1830, 256, %s9, [#allocation4], 128, 128, 8
    $region49: #{_encoder_block.1} parent=1 // pred_fallthru
      _
    // Predicated region
    $region50: #{_encoder_block.1} parent=1 // pred_check
      _
    $region51: #{_encoder_block.1} parent=1 // pred_check_branch
      %1837 = sbr.rel (0) target = $region53
    $region52: #{_encoder_block.1} parent=1 // pred_region
      %1838 = dma.done [#allocation4], 256
    $region53: #{_encoder_block.1} parent=1 // pred_fallthru
      _
    %1839 = vsyncpa [#allocation3], 1
    %1840 = vsyncpa [#allocation4], 1
    %1841 = vsyncpa [#allocation5], 1

</llo_original>
